<compile_context>
chip_gen: v7x
topology: tpu7x:2x2x1
jax: 0.10.0
libtpu: 0.0.40
codegen_flags: <defaults>
</compile_context>

<pallas_src>
import jax
import jax.numpy as jnp
from jax.experimental import pallas as pl
from jax.experimental.pallas import tpu as pltpu

IMAGE_SIZE = 28 * 28   # 784
HIDDEN = 256


def _leaky_relu(x, slope=0.2):
    return jnp.where(x > 0, x, slope * x)


def discriminator_kernel(x_ref, w1_ref, b1_ref, w2_ref, b2_ref, w3_ref, b3_ref,
                         o_ref):
    """Fused 3-layer MLP forward for one batch tile.

    x_ref  : (TB, 784)  f32 VMEM (cast to bf16 in-kernel)
    w1_ref : (784, 256) bf16      b1_ref : (1, 256) f32
    w2_ref : (256, 256) bf16      b2_ref : (1, 256) f32
    w3_ref : (256, 1)   bf16      b3_ref : (1, 1)   f32
    o_ref  : (TB, 1)    f32
    """
    # x streamed as f32 (no wrapper-side cast/pad round trip); cast to bf16 on
    # the VPU so all three GEMMs run on the MXU with f32 accumulation.
    x = x_ref[...].astype(jnp.bfloat16)                       # (TB, 784)

    # Layer 1: Linear(784 -> 256) + LeakyReLU(0.2)
    h1 = jnp.dot(x, w1_ref[...], preferred_element_type=jnp.float32)
    h1 = _leaky_relu(h1 + b1_ref[...])                        # (TB, 256) f32

    # Layer 2: Linear(256 -> 256) + LeakyReLU(0.2)
    h2 = jnp.dot(h1.astype(jnp.bfloat16), w2_ref[...],
                 preferred_element_type=jnp.float32)
    h2 = _leaky_relu(h2 + b2_ref[...])                        # (TB, 256) f32

    # Layer 3: Linear(256 -> 1) + Sigmoid.  A 256x1 MXU matmul (<0.1% extra
    # MXU work) replaces the previous XLU transpose + VPU reduction.
    logit = jnp.dot(h2.astype(jnp.bfloat16), w3_ref[...],
                    preferred_element_type=jnp.float32)       # (TB, 1) f32
    o_ref[...] = jax.nn.sigmoid(logit + b3_ref[...]).astype(o_ref.dtype)


def _round_up(n, m):
    return ((n + m - 1) // m) * m


def _pick_batch_tile(B, requested):
    if B <= 256:
        # One tile covering the (sublane-padded) batch.
        return _round_up(max(B, 8), 8)
    # Multiple of 256 (clean MXU M-passes), never larger than the array so
    # block_shape <= array_shape; ragged last tile is handled by Pallas.
    # For 256 < B <= 512 this gives a 256 tile -> >= 2 grid steps for v7x
    # megacore.  For big batches, big tiles amortize the ~0.35 us/step grid
    # overhead.
    bt = min(requested, 2048, (B // 256) * 256)
    return max(256, bt)


def discriminator_forward(x, params, *, batch_tile=1024):
    """x: (B, 784) float32.  Returns (B, 1) float32 in [0, 1]."""
    w1, b1, w2, b2, w3, b3 = params
    B, D = x.shape
    assert D == IMAGE_SIZE

    bt = _pick_batch_tile(B, batch_tile)

    # Tiny row pad only when the single tile exceeds the batch (B <= 256 and
    # B % 8 != 0).  Large batches are streamed unpadded in native f32.
    Bp = bt if bt > B else B
    if Bp != B:
        x = jnp.pad(x, ((0, Bp - B), (0, 0)))

    num_tiles = pl.cdiv(Bp, bt)

    # Weights fed to the MXU in bf16; biases stay f32 for the epilogue.
    w1b = w1.astype(jnp.bfloat16)
    w2b = w2.astype(jnp.bfloat16)
    w3b = w3.astype(jnp.bfloat16)

    full = lambda shape: pl.BlockSpec(shape, lambda i: (0, 0))

    flops = 2 * Bp * (IMAGE_SIZE * HIDDEN + HIDDEN * HIDDEN + HIDDEN)
    bytes_accessed = (Bp * IMAGE_SIZE * 4                       # x (f32)
                      + (IMAGE_SIZE * HIDDEN + HIDDEN * HIDDEN + HIDDEN) * 2
                      + 2 * HIDDEN * 4 + 4                      # biases
                      + Bp * 4)                                 # output

    out = pl.pallas_call(
        discriminator_kernel,
        out_shape=jax.ShapeDtypeStruct((Bp, 1), jnp.float32),
        grid_spec=pltpu.PrefetchScalarGridSpec(
            num_scalar_prefetch=0,
            grid=(num_tiles,),
            in_specs=[
                pl.BlockSpec((bt, IMAGE_SIZE), lambda i: (i, 0)),  # x (f32)
                full((IMAGE_SIZE, HIDDEN)),   # w1 (bf16)
                full((1, HIDDEN)),            # b1 (f32)
                full((HIDDEN, HIDDEN)),       # w2 (bf16)
                full((1, HIDDEN)),            # b2 (f32)
                full((HIDDEN, 1)),            # w3 (bf16)
                full((1, 1)),                 # b3 (f32)
            ],
            out_specs=pl.BlockSpec((bt, 1), lambda i: (i, 0)),
        ),
        compiler_params=pltpu.CompilerParams(
            dimension_semantics=("parallel",),
            # Raise v5e's 16 MiB scoped default; well under v7x's 64 MiB
            # physical VMEM.  Footprint at bt=2048 is ~25 MiB.
            vmem_limit_bytes=32 * 1024 * 1024,
        ),
        cost_estimate=pl.CostEstimate(
            flops=flops, transcendentals=Bp, bytes_accessed=bytes_accessed),
    )(x, w1b, b1, w2b, b2, w3b, b3)

    return out[:B] if Bp != B else out


def init_params(key):
    """Deterministic init mirroring PyTorch's default Linear init:
    U(-1/sqrt(fan_in), 1/sqrt(fan_in)) for both weights and biases."""
    ks = jax.random.split(key, 6)

    def linear(kw, kb, fan_in, fan_out):
        bound = 1.0 / jnp.sqrt(fan_in)
        # stored as (in, out) so the kernel computes x @ W
        w = jax.random.uniform(kw, (fan_in, fan_out), jnp.float32, -bound, bound)
        b = jax.random.uniform(kb, (1, fan_out), jnp.float32, -bound, bound)
        return w, b

    w1, b1 = linear(ks[0], ks[1], IMAGE_SIZE, HIDDEN)
    w2, b2 = linear(ks[2], ks[3], HIDDEN, HIDDEN)
    w3, b3 = linear(ks[4], ks[5], HIDDEN, 1)
    return (w1, b1, w2, b2, w3, b3)


def reference_forward(x, params):
    """Pure-JAX f32 reference for correctness checking."""
    w1, b1, w2, b2, w3, b3 = params
    h = _leaky_relu(x @ w1 + b1)
    h = _leaky_relu(h @ w2 + b2)
    return jax.nn.sigmoid(h @ w3 + b3)


if __name__ == "__main__":
    key = jax.random.PRNGKey(0)
    k_params, k_x = jax.random.split(key)

    params = init_params(k_params)

    # Flattened 28x28 "images" in [-1, 1] (tanh-GAN style data).
    # B=200: single full tile (sublane-aligned, no grid remainder).
    # B=384: two 256-tiles with a ragged last tile (exercises partial blocks).
    for B in (200, 384):
        x = jax.random.uniform(jax.random.fold_in(k_x, B),
                               (B, IMAGE_SIZE), jnp.float32, -1.0, 1.0)
        out = jax.block_until_ready(discriminator_forward(x, params))
        ref = reference_forward(x, params)
        assert out.shape == (B, 1), out.shape
        # bf16 GEMM inputs with f32 accumulation -> loosened tolerance vs f32 ref.
        err = float(jnp.max(jnp.abs(out - ref)))
        assert err < 2e-2, err

    print("KERNEL_OK")
</pallas_src>

<mosaic_0001>
module attributes {stable_mosaic.version = 11 : i64} {
  func.func @discriminator_kernel(%arg0: i32, %arg1: memref<200x784xf32, #tpu.memory_space<vmem>>, %arg2: memref<784x256xbf16, #tpu.memory_space<vmem>>, %arg3: memref<1x256xf32, #tpu.memory_space<vmem>>, %arg4: memref<256x256xbf16, #tpu.memory_space<vmem>>, %arg5: memref<1x256xf32, #tpu.memory_space<vmem>>, %arg6: memref<256x1xbf16, #tpu.memory_space<vmem>>, %arg7: memref<1x1xf32, #tpu.memory_space<vmem>>, %arg8: memref<200x1xf32, #tpu.memory_space<vmem>>) attributes {dimension_semantics = [#tpu.dimension_semantics<parallel>], iteration_bounds = array<i64: 1>, scalar_prefetch = 0 : i64, scratch_operands = 0 : i64, tpu.core_type = #tpu.core_type<tc>, window_params = [{transform_indices = @transform_0, window_bounds = array<i64: 200, 784>}, {pipeline_mode = #tpu.pipeline_mode<synchronous>, transform_indices = @transform_1, window_bounds = array<i64: 784, 256>}, {pipeline_mode = #tpu.pipeline_mode<synchronous>, transform_indices = @transform_2, window_bounds = array<i64: 1, 256>}, {pipeline_mode = #tpu.pipeline_mode<synchronous>, transform_indices = @transform_3, window_bounds = array<i64: 256, 256>}, {pipeline_mode = #tpu.pipeline_mode<synchronous>, transform_indices = @transform_4, window_bounds = array<i64: 1, 256>}, {pipeline_mode = #tpu.pipeline_mode<synchronous>, transform_indices = @transform_5, window_bounds = array<i64: 256, 1>}, {pipeline_mode = #tpu.pipeline_mode<synchronous>, transform_indices = @transform_6, window_bounds = array<i64: 1, 1>}, {transform_indices = @transform_7, window_bounds = array<i64: 200, 1>}]} {
    %c0 = arith.constant 0 : index
    %c0_0 = arith.constant 0 : index
    %0 = vector.load %arg1[%c0, %c0_0] : memref<200x784xf32, #tpu.memory_space<vmem>>, vector<200x784xf32>
    %1 = arith.truncf %0 : vector<200x784xf32> to vector<200x784xbf16>
    %c0_1 = arith.constant 0 : index
    %c0_2 = arith.constant 0 : index
    %2 = vector.load %arg2[%c0_1, %c0_2] : memref<784x256xbf16, #tpu.memory_space<vmem>>, vector<784x256xbf16>
    %cst = arith.constant dense<0.000000e+00> : vector<200x256xf32>
    %3 = tpu.matmul %1, %2, %cst {dimension_numbers = #tpu.dot_dimension_numbers<[1], [0], [0], [1], [0, 0, 1, 1], [], []>} : vector<200x784xbf16>, vector<784x256xbf16>, vector<200x256xf32> -> vector<200x256xf32>
    %c0_3 = arith.constant 0 : index
    %c0_4 = arith.constant 0 : index
    %4 = vector.load %arg3[%c0_3, %c0_4] : memref<1x256xf32, #tpu.memory_space<vmem>>, vector<1x256xf32>
    %5 = vector.broadcast %4 : vector<1x256xf32> to vector<200x256xf32>
    %6 = arith.addf %3, %5 : vector<200x256xf32>
    %cst_5 = arith.constant 0.000000e+00 : f32
    %7 = vector.broadcast %cst_5 : f32 to vector<200x256xf32>
    %8 = arith.cmpf ogt, %6, %7 : vector<200x256xf32>
    %cst_6 = arith.constant 2.000000e-01 : f32
    %9 = vector.broadcast %cst_6 : f32 to vector<200x256xf32>
    %10 = arith.mulf %9, %6 : vector<200x256xf32>
    %11 = arith.select %8, %6, %10 : vector<200x256xi1>, vector<200x256xf32>
    %12 = arith.truncf %11 : vector<200x256xf32> to vector<200x256xbf16>
    %c0_7 = arith.constant 0 : index
    %c0_8 = arith.constant 0 : index
    %13 = vector.load %arg4[%c0_7, %c0_8] : memref<256x256xbf16, #tpu.memory_space<vmem>>, vector<256x256xbf16>
    %cst_9 = arith.constant dense<0.000000e+00> : vector<200x256xf32>
    %14 = tpu.matmul %12, %13, %cst_9 {dimension_numbers = #tpu.dot_dimension_numbers<[1], [0], [0], [1], [0, 0, 1, 1], [], []>} : vector<200x256xbf16>, vector<256x256xbf16>, vector<200x256xf32> -> vector<200x256xf32>
    %c0_10 = arith.constant 0 : index
    %c0_11 = arith.constant 0 : index
    %15 = vector.load %arg5[%c0_10, %c0_11] : memref<1x256xf32, #tpu.memory_space<vmem>>, vector<1x256xf32>
    %16 = vector.broadcast %15 : vector<1x256xf32> to vector<200x256xf32>
    %17 = arith.addf %14, %16 : vector<200x256xf32>
    %cst_12 = arith.constant 0.000000e+00 : f32
    %18 = vector.broadcast %cst_12 : f32 to vector<200x256xf32>
    %19 = arith.cmpf ogt, %17, %18 : vector<200x256xf32>
    %cst_13 = arith.constant 2.000000e-01 : f32
    %20 = vector.broadcast %cst_13 : f32 to vector<200x256xf32>
    %21 = arith.mulf %20, %17 : vector<200x256xf32>
    %22 = arith.select %19, %17, %21 : vector<200x256xi1>, vector<200x256xf32>
    %23 = arith.truncf %22 : vector<200x256xf32> to vector<200x256xbf16>
    %c0_14 = arith.constant 0 : index
    %c0_15 = arith.constant 0 : index
    %24 = vector.load %arg6[%c0_14, %c0_15] : memref<256x1xbf16, #tpu.memory_space<vmem>>, vector<256x1xbf16>
    %cst_16 = arith.constant dense<0.000000e+00> : vector<200x1xf32>
    %25 = tpu.matmul %23, %24, %cst_16 {dimension_numbers = #tpu.dot_dimension_numbers<[1], [0], [0], [1], [0, 0, 1, 1], [], []>} : vector<200x256xbf16>, vector<256x1xbf16>, vector<200x1xf32> -> vector<200x1xf32>
    %c0_17 = arith.constant 0 : index
    %c0_18 = arith.constant 0 : index
    %26 = vector.load %arg7[%c0_17, %c0_18] : memref<1x1xf32, #tpu.memory_space<vmem>>, vector<1x1xf32>
    %27 = vector.broadcast %26 : vector<1x1xf32> to vector<200x1xf32>
    %28 = arith.addf %25, %27 : vector<200x1xf32>
    %29 = arith.negf %28 : vector<200x1xf32>
    %30 = math.exp %29 : vector<200x1xf32>
    %cst_19 = arith.constant 1.000000e+00 : f32
    %31 = vector.broadcast %cst_19 : f32 to vector<200x1xf32>
    %32 = arith.addf %31, %30 : vector<200x1xf32>
    %33 = arith.divf %31, %32 : vector<200x1xf32>
    %c0_20 = arith.constant 0 : index
    %c0_21 = arith.constant 0 : index
    %34 = vector.load %arg8[%c0_20, %c0_21] : memref<200x1xf32, #tpu.memory_space<vmem>>, vector<200x1xf32>
    tpu.vector_store %arg8[%c0_20, %c0_21], %33 {strides = array<i32>} : memref<200x1xf32, #tpu.memory_space<vmem>>, vector<200x1xf32>,
    return
  }
  func.func @transform_0(%arg0: i32) -> (i32, i32) {
    %c0_i32 = arith.constant 0 : i32
    %c0_i32_0 = arith.constant 0 : i32
    return %arg0, %c0_i32 : i32, i32
  }
  func.func @transform_1(%arg0: i32) -> (i32, i32) {
    %c0_i32 = arith.constant 0 : i32
    %c0_i32_0 = arith.constant 0 : i32
    %c0_i32_1 = arith.constant 0 : i32
    return %c0_i32, %c0_i32_0 : i32, i32
  }
  func.func @transform_2(%arg0: i32) -> (i32, i32) {
    %c0_i32 = arith.constant 0 : i32
    %c0_i32_0 = arith.constant 0 : i32
    %c0_i32_1 = arith.constant 0 : i32
    return %c0_i32, %c0_i32_0 : i32, i32
  }
  func.func @transform_3(%arg0: i32) -> (i32, i32) {
    %c0_i32 = arith.constant 0 : i32
    %c0_i32_0 = arith.constant 0 : i32
    %c0_i32_1 = arith.constant 0 : i32
    return %c0_i32, %c0_i32_0 : i32, i32
  }
  func.func @transform_4(%arg0: i32) -> (i32, i32) {
    %c0_i32 = arith.constant 0 : i32
    %c0_i32_0 = arith.constant 0 : i32
    %c0_i32_1 = arith.constant 0 : i32
    return %c0_i32, %c0_i32_0 : i32, i32
  }
  func.func @transform_5(%arg0: i32) -> (i32, i32) {
    %c0_i32 = arith.constant 0 : i32
    %c0_i32_0 = arith.constant 0 : i32
    %c0_i32_1 = arith.constant 0 : i32
    return %c0_i32, %c0_i32_0 : i32, i32
  }
  func.func @transform_6(%arg0: i32) -> (i32, i32) {
    %c0_i32 = arith.constant 0 : i32
    %c0_i32_0 = arith.constant 0 : i32
    %c0_i32_1 = arith.constant 0 : i32
    return %c0_i32, %c0_i32_0 : i32, i32
  }
  func.func @transform_7(%arg0: i32) -> (i32, i32) {
    %c0_i32 = arith.constant 0 : i32
    %c0_i32_0 = arith.constant 0 : i32
    return %arg0, %c0_i32 : i32, i32
  }
}

</mosaic_0001>

<llo_original>
// kernel: tpu_custom_call.1
$region0: #{tpu_custom_call.1}
  #allocation0 [shape = 'u32[]', space=smem, size = 0x4, offset = 0x4, fixed_abs, tag = 'smem constant byte address 0x4 - core index']
  #allocation1 [shape = 'u32[144,128]{1,0:T(1,128)}', space=vmem, size = 0x12000, scoped, tag = 'internal scratch']
  #allocation2 [shape = 'f32[1,1]{1,0:T(1,128)S(1)}', space=vmem, size = 0x200, scoped, tag = 'scoped memory for tpu_custom_call.1']
  %s0 = inlined_call_operand.hbm [shape: f32[200,784], index: 0, kind: input, shape index: {}]
  %s1 = inlined_call_operand.hbm [shape: bf16[784,256], index: 1, kind: input, shape index: {}]
  %s2 = inlined_call_operand.vmem [shape: f32[1,256], index: 2, kind: input, shape index: {}]
  %s3 = inlined_call_operand.hbm [shape: bf16[256,256], index: 3, kind: input, shape index: {}]
  %s4 = inlined_call_operand.vmem [shape: f32[1,256], index: 4, kind: input, shape index: {}]
  %s5 = inlined_call_operand.vmem [shape: bf16[256,1], index: 5, kind: input, shape index: {}]
  %s6 = inlined_call_operand.<no memory space> [shape: f32[1,1], index: 6, kind: input, shape index: {}]
  %s7 = inlined_call_operand.vmem [shape: f32[200,1], index: 7, kind: output, shape index: {}]
  %s8 = sld [smem:[#allocation0]]
  $region50: #{tpu_custom_call.1} parent=0
    _
  %s10 = ssub.s32 1, %s8
  %s11 = scalar_select 0, %s10, %s8
  %v12 = vstv %s6
  %13 = vst [vmem:[#allocation2] sm:$0x1] %v12
  $region1: #{tpu_custom_call.1} parent=0
    #allocation3 [shape = 'u8[716800]{0}', space=vmem, size = 0xaf000, scoped, tag = 'input window, operand 0, single buffered']
    #allocation4 [shape = 's32[1]{0}', space=sflag, size = 0x4, scoped, tag = 'scoped memory for tpu_custom_call.1']
    #allocation5 [shape = 'u8[401408]{0}', space=vmem, size = 0x62000, scoped, tag = 'input window, operand 1, single buffered']
    #allocation6 [shape = 's32[1]{0}', space=sflag, size = 0x4, scoped, tag = 'scoped memory for tpu_custom_call.1']
    #allocation7 [shape = 'u8[131072]{0}', space=vmem, size = 0x20000, scoped, tag = 'input window, operand 3, single buffered']
    %14 = vsyncpa [#allocation4], 0
    %15 = vsyncpa [#allocation6], 0
    // Predicated region
    $region2: #{tpu_custom_call.1} parent=1 // pred_check
      _
    $region3: #{tpu_custom_call.1} parent=1 // pred_check_branch
      %17 = sbr.rel (0) target = $region5
    $region4: #{tpu_custom_call.1} parent=1 // pred_region
      %s19 = ssub.s32 22400, 22400
      %20 = vsyncadd [#allocation4], %s19
      %s21 = sshll.u32 [#allocation3], 4
      %s22 = int_to_ptr.vmem [resolvable:$true] %s21
      %27 = dma.hbm_to_vmem [thread:$0]  %s0, 22400, %s22, [#allocation4], 896, 896, 56
    $region5: #{tpu_custom_call.1} parent=1 // pred_fallthru
      _
    // Predicated region
    $region6: #{tpu_custom_call.1} parent=1 // pred_check
      _
    $region7: #{tpu_custom_call.1} parent=1 // pred_check_branch
      %29 = sbr.rel (0) target = $region9
    $region8: #{tpu_custom_call.1} parent=1 // pred_region
      %s31 = ssub.s32 12544, 12544
      %32 = vsyncadd [#allocation6], %s31
      %s33 = sshll.u32 [#allocation5], 4
      %s34 = int_to_ptr.vmem [resolvable:$true] %s33
      %39 = dma.hbm_to_vmem [thread:$0]  %s1, 12544, %s34, [#allocation6], 128, 128, 8
    $region9: #{tpu_custom_call.1} parent=1 // pred_fallthru
      _
    // Predicated region
    $region10: #{tpu_custom_call.1} parent=1 // pred_check
      _
    $region11: #{tpu_custom_call.1} parent=1 // pred_check_branch
      %41 = sbr.rel (0) target = $region13
    $region12: #{tpu_custom_call.1} parent=1 // pred_region
      _
    $region13: #{tpu_custom_call.1} parent=1 // pred_fallthru
      _
    // Predicated region
    $region14: #{tpu_custom_call.1} parent=1 // pred_check
      _
    $region15: #{tpu_custom_call.1} parent=1 // pred_check_branch
      %43 = sbr.rel (0) target = $region17
    $region16: #{tpu_custom_call.1} parent=1 // pred_region
      %s45 = ssub.s32 4096, 4096
      %46 = vsyncadd [#allocation6], %s45
      %s47 = sshll.u32 [#allocation7], 4
      %s48 = int_to_ptr.vmem [resolvable:$true] %s47
      %53 = dma.hbm_to_vmem [thread:$0]  %s3, 4096, %s48, [#allocation6], 128, 128, 8
    $region17: #{tpu_custom_call.1} parent=1 // pred_fallthru
      _
    // Predicated region
    $region18: #{tpu_custom_call.1} parent=1 // pred_check
      _
    $region19: #{tpu_custom_call.1} parent=1 // pred_check_branch
      %55 = sbr.rel (0) target = $region21
    $region20: #{tpu_custom_call.1} parent=1 // pred_region
      _
    $region21: #{tpu_custom_call.1} parent=1 // pred_fallthru
      _
    // Predicated region
    $region22: #{tpu_custom_call.1} parent=1 // pred_check
      _
    $region23: #{tpu_custom_call.1} parent=1 // pred_check_branch
      %57 = sbr.rel (0) target = $region25
    $region24: #{tpu_custom_call.1} parent=1 // pred_region
      _
    $region25: #{tpu_custom_call.1} parent=1 // pred_fallthru
      _
    // Predicated region
    $region26: #{tpu_custom_call.1} parent=1 // pred_check
      _
    $region27: #{tpu_custom_call.1} parent=1 // pred_check_branch
      %59 = sbr.rel (0) target = $region29
    $region28: #{tpu_custom_call.1} parent=1 // pred_region
      _
    $region29: #{tpu_custom_call.1} parent=1 // pred_fallthru
      _
    // Predicated region
    $region30: #{tpu_custom_call.1} parent=1 // pred_check
      _
    $region31: #{tpu_custom_call.1} parent=1 // pred_check_branch
      %61 = sbr.rel (0) target = $region33
    $region32: #{tpu_custom_call.1} parent=1 // pred_region
      %62 = dma.done [#allocation4], 22400
    $region33: #{tpu_custom_call.1} parent=1 // pred_fallthru
      _
    // Predicated region
    $region34: #{tpu_custom_call.1} parent=1 // pred_check
      _
    $region35: #{tpu_custom_call.1} parent=1 // pred_check_branch
      %64 = sbr.rel (0) target = $region37
    $region36: #{tpu_custom_call.1} parent=1 // pred_region
      %65 = dma.done [#allocation6], 12544
    $region37: #{tpu_custom_call.1} parent=1 // pred_fallthru
      _
    // Predicated region
    $region38: #{tpu_custom_call.1} parent=1 // pred_check
      _
    $region39: #{tpu_custom_call.1} parent=1 // pred_check_branch
      %67 = sbr.rel (0) target = $region41
    $region40: #{tpu_custom_call.1} parent=1 // pred_region
      %68 = dma.done [#allocation6], 4096
    $region41: #{tpu_custom_call.1} parent=1 // pred_fallthru
      _
    %v70 = vld [vmem:[#allocation3] sm:$0xff]
    %v71 = vld [vmem:[#allocation3 + $0x8] sm:$0xff]
    %v72 = vld [vmem:[#allocation3 + $0x10] sm:$0xff]
    %v73 = vld [vmem:[#allocation3 + $0x18] sm:$0xff]
    %v74 = vld [vmem:[#allocation3 + $0x20] sm:$0xff]
    %v75 = vld [vmem:[#allocation3 + $0x28] sm:$0xff]
    %v76 = vld [vmem:[#allocation3 + $0x30] sm:$0xff]
    %v77 = vld [vmem:[#allocation3 + $0x38] sm:$0xff]
    %v78 = vld [vmem:[#allocation3 + $0x40] sm:$0xff]
    %v79 = vld [vmem:[#allocation3 + $0x48] sm:$0xff]
    %v80 = vld [vmem:[#allocation3 + $0x50] sm:$0xff]
    %v81 = vld [vmem:[#allocation3 + $0x58] sm:$0xff]
    %v82 = vld [vmem:[#allocation3 + $0x60] sm:$0xff]
    %v83 = vld [vmem:[#allocation3 + $0x68] sm:$0xff]
    %v84 = vld [vmem:[#allocation3 + $0x70] sm:$0xff]
    %v85 = vld [vmem:[#allocation3 + $0x78] sm:$0xff]
    %v86 = vld [vmem:[#allocation3 + $0x80] sm:$0xff]
    %v87 = vld [vmem:[#allocation3 + $0x88] sm:$0xff]
    %v88 = vld [vmem:[#allocation3 + $0x90] sm:$0xff]
    %v89 = vld [vmem:[#allocation3 + $0x98] sm:$0xff]
    %v90 = vld [vmem:[#allocation3 + $0xa0] sm:$0xff]
    %v91 = vld [vmem:[#allocation3 + $0xa8] sm:$0xff]
    %v92 = vld [vmem:[#allocation3 + $0xb0] sm:$0xff]
    %v93 = vld [vmem:[#allocation3 + $0xb8] sm:$0xff]
    %v94 = vld [vmem:[#allocation3 + $0xc0] sm:$0xff]
    %v95 = vld [vmem:[#allocation3 + $0xc8] sm:$0xff]
    %v96 = vld [vmem:[#allocation3 + $0xd0] sm:$0xff]
    %v97 = vld [vmem:[#allocation3 + $0xd8] sm:$0xff]
    %v98 = vld [vmem:[#allocation3 + $0xe0] sm:$0xff]
    %v99 = vld [vmem:[#allocation3 + $0xe8] sm:$0xff]
    %v100 = vld [vmem:[#allocation3 + $0xf0] sm:$0xff]
    %v101 = vld [vmem:[#allocation3 + $0xf8] sm:$0xff]
    %v102 = vld [vmem:[#allocation3 + $0x100] sm:$0xff]
    %v103 = vld [vmem:[#allocation3 + $0x108] sm:$0xff]
    %v104 = vld [vmem:[#allocation3 + $0x110] sm:$0xff]
    %v105 = vld [vmem:[#allocation3 + $0x118] sm:$0xff]
    %v106 = vld [vmem:[#allocation3 + $0x120] sm:$0xff]
    %v107 = vld [vmem:[#allocation3 + $0x128] sm:$0xff]
    %v108 = vld [vmem:[#allocation3 + $0x130] sm:$0xff]
    %v109 = vld [vmem:[#allocation3 + $0x138] sm:$0xff]
    %v110 = vld [vmem:[#allocation3 + $0x140] sm:$0xff]
    %v111 = vld [vmem:[#allocation3 + $0x148] sm:$0xff]
    %v112 = vld [vmem:[#allocation3 + $0x150] sm:$0xff]
    %v113 = vld [vmem:[#allocation3 + $0x158] sm:$0xff]
    %v114 = vld [vmem:[#allocation3 + $0x160] sm:$0xff]
    %v115 = vld [vmem:[#allocation3 + $0x168] sm:$0xff]
    %v116 = vld [vmem:[#allocation3 + $0x170] sm:$0xff]
    %v117 = vld [vmem:[#allocation3 + $0x178] sm:$0xff]
    %v118 = vld [vmem:[#allocation3 + $0x180] sm:$0xff]
    %v119 = vld [vmem:[#allocation3 + $0x188] sm:$0xff]
    %v120 = vld [vmem:[#allocation3 + $0x190] sm:$0xff]
    %v121 = vld [vmem:[#allocation3 + $0x198] sm:$0xff]
    %v122 = vld [vmem:[#allocation3 + $0x1a0] sm:$0xff]
    %v123 = vld [vmem:[#allocation3 + $0x1a8] sm:$0xff]
    %v124 = vld [vmem:[#allocation3 + $0x1b0] sm:$0xff]
    %v125 = vld [vmem:[#allocation3 + $0x1b8] sm:$0xff]
    %v126 = vld [vmem:[#allocation3 + $0x1c0] sm:$0xff]
    %v127 = vld [vmem:[#allocation3 + $0x1c8] sm:$0xff]
    %v128 = vld [vmem:[#allocation3 + $0x1d0] sm:$0xff]
    %v129 = vld [vmem:[#allocation3 + $0x1d8] sm:$0xff]
    %v130 = vld [vmem:[#allocation3 + $0x1e0] sm:$0xff]
    %v131 = vld [vmem:[#allocation3 + $0x1e8] sm:$0xff]
    %v132 = vld [vmem:[#allocation3 + $0x1f0] sm:$0xff]
    %v133 = vld [vmem:[#allocation3 + $0x1f8] sm:$0xff]
    %v134 = vld [vmem:[#allocation3 + $0x200] sm:$0xff]
    %v135 = vld [vmem:[#allocation3 + $0x208] sm:$0xff]
    %v136 = vld [vmem:[#allocation3 + $0x210] sm:$0xff]
    %v137 = vld [vmem:[#allocation3 + $0x218] sm:$0xff]
    %v138 = vld [vmem:[#allocation3 + $0x220] sm:$0xff]
    %v139 = vld [vmem:[#allocation3 + $0x228] sm:$0xff]
    %v140 = vld [vmem:[#allocation3 + $0x230] sm:$0xff]
    %v141 = vld [vmem:[#allocation3 + $0x238] sm:$0xff]
    %v142 = vld [vmem:[#allocation3 + $0x240] sm:$0xff]
    %v143 = vld [vmem:[#allocation3 + $0x248] sm:$0xff]
    %v144 = vld [vmem:[#allocation3 + $0x250] sm:$0xff]
    %v145 = vld [vmem:[#allocation3 + $0x258] sm:$0xff]
    %v146 = vld [vmem:[#allocation3 + $0x260] sm:$0xff]
    %v147 = vld [vmem:[#allocation3 + $0x268] sm:$0xff]
    %v148 = vld [vmem:[#allocation3 + $0x270] sm:$0xff]
    %v149 = vld [vmem:[#allocation3 + $0x278] sm:$0xff]
    %v150 = vld [vmem:[#allocation3 + $0x280] sm:$0xff]
    %v151 = vld [vmem:[#allocation3 + $0x288] sm:$0xff]
    %v152 = vld [vmem:[#allocation3 + $0x290] sm:$0xff]
    %v153 = vld [vmem:[#allocation3 + $0x298] sm:$0xff]
    %v154 = vld [vmem:[#allocation3 + $0x2a0] sm:$0xff]
    %v155 = vld [vmem:[#allocation3 + $0x2a8] sm:$0xff]
    %v156 = vld [vmem:[#allocation3 + $0x2b0] sm:$0xff]
    %v157 = vld [vmem:[#allocation3 + $0x2b8] sm:$0xff]
    %v158 = vld [vmem:[#allocation3 + $0x2c0] sm:$0xff]
    %v159 = vld [vmem:[#allocation3 + $0x2c8] sm:$0xff]
    %v160 = vld [vmem:[#allocation3 + $0x2d0] sm:$0xff]
    %v161 = vld [vmem:[#allocation3 + $0x2d8] sm:$0xff]
    %v162 = vld [vmem:[#allocation3 + $0x2e0] sm:$0xff]
    %v163 = vld [vmem:[#allocation3 + $0x2e8] sm:$0xff]
    %v164 = vld [vmem:[#allocation3 + $0x2f0] sm:$0xff]
    %v165 = vld [vmem:[#allocation3 + $0x2f8] sm:$0xff]
    %v166 = vld [vmem:[#allocation3 + $0x300] sm:$0xff]
    %v167 = vld [vmem:[#allocation3 + $0x308] sm:$0xff]
    %v168 = vld [vmem:[#allocation3 + $0x310] sm:$0xff]
    %v169 = vld [vmem:[#allocation3 + $0x318] sm:$0xff]
    %v170 = vld [vmem:[#allocation3 + $0x320] sm:$0xff]
    %v171 = vld [vmem:[#allocation3 + $0x328] sm:$0xff]
    %v172 = vld [vmem:[#allocation3 + $0x330] sm:$0xff]
    %v173 = vld [vmem:[#allocation3 + $0x338] sm:$0xff]
    %v174 = vld [vmem:[#allocation3 + $0x340] sm:$0xff]
    %v175 = vld [vmem:[#allocation3 + $0x348] sm:$0xff]
    %v176 = vld [vmem:[#allocation3 + $0x350] sm:$0xff]
    %v177 = vld [vmem:[#allocation3 + $0x358] sm:$0xff]
    %v178 = vld [vmem:[#allocation3 + $0x360] sm:$0xff]
    %v179 = vld [vmem:[#allocation3 + $0x368] sm:$0xff]
    %v180 = vld [vmem:[#allocation3 + $0x370] sm:$0xff]
    %v181 = vld [vmem:[#allocation3 + $0x378] sm:$0xff]
    %v182 = vld [vmem:[#allocation3 + $0x380] sm:$0xff]
    %v183 = vld [vmem:[#allocation3 + $0x388] sm:$0xff]
    %v184 = vld [vmem:[#allocation3 + $0x390] sm:$0xff]
    %v185 = vld [vmem:[#allocation3 + $0x398] sm:$0xff]
    %v186 = vld [vmem:[#allocation3 + $0x3a0] sm:$0xff]
    %v187 = vld [vmem:[#allocation3 + $0x3a8] sm:$0xff]
    %v188 = vld [vmem:[#allocation3 + $0x3b0] sm:$0xff]
    %v189 = vld [vmem:[#allocation3 + $0x3b8] sm:$0xff]
    %v190 = vld [vmem:[#allocation3 + $0x3c0] sm:$0xff]
    %v191 = vld [vmem:[#allocation3 + $0x3c8] sm:$0xff]
    %v192 = vld [vmem:[#allocation3 + $0x3d0] sm:$0xff]
    %v193 = vld [vmem:[#allocation3 + $0x3d8] sm:$0xff]
    %v194 = vld [vmem:[#allocation3 + $0x3e0] sm:$0xff]
    %v195 = vld [vmem:[#allocation3 + $0x3e8] sm:$0xff]
    %v196 = vld [vmem:[#allocation3 + $0x3f0] sm:$0xff]
    %v197 = vld [vmem:[#allocation3 + $0x3f8] sm:$0xff]
    %v198 = vld [vmem:[#allocation3 + $0x400] sm:$0xff]
    %v199 = vld [vmem:[#allocation3 + $0x408] sm:$0xff]
    %v200 = vld [vmem:[#allocation3 + $0x410] sm:$0xff]
    %v201 = vld [vmem:[#allocation3 + $0x418] sm:$0xff]
    %v202 = vld [vmem:[#allocation3 + $0x420] sm:$0xff]
    %v203 = vld [vmem:[#allocation3 + $0x428] sm:$0xff]
    %v204 = vld [vmem:[#allocation3 + $0x430] sm:$0xff]
    %v205 = vld [vmem:[#allocation3 + $0x438] sm:$0xff]
    %v206 = vld [vmem:[#allocation3 + $0x440] sm:$0xff]
    %v207 = vld [vmem:[#allocation3 + $0x448] sm:$0xff]
    %v208 = vld [vmem:[#allocation3 + $0x450] sm:$0xff]
    %v209 = vld [vmem:[#allocation3 + $0x458] sm:$0xff]
    %v210 = vld [vmem:[#allocation3 + $0x460] sm:$0xff]
    %v211 = vld [vmem:[#allocation3 + $0x468] sm:$0xff]
    %v212 = vld [vmem:[#allocation3 + $0x470] sm:$0xff]
    %v213 = vld [vmem:[#allocation3 + $0x478] sm:$0xff]
    %v214 = vld [vmem:[#allocation3 + $0x480] sm:$0xff]
    %v215 = vld [vmem:[#allocation3 + $0x488] sm:$0xff]
    %v216 = vld [vmem:[#allocation3 + $0x490] sm:$0xff]
    %v217 = vld [vmem:[#allocation3 + $0x498] sm:$0xff]
    %v218 = vld [vmem:[#allocation3 + $0x4a0] sm:$0xff]
    %v219 = vld [vmem:[#allocation3 + $0x4a8] sm:$0xff]
    %v220 = vld [vmem:[#allocation3 + $0x4b0] sm:$0xff]
    %v221 = vld [vmem:[#allocation3 + $0x4b8] sm:$0xff]
    %v222 = vld [vmem:[#allocation3 + $0x4c0] sm:$0xff]
    %v223 = vld [vmem:[#allocation3 + $0x4c8] sm:$0xff]
    %v224 = vld [vmem:[#allocation3 + $0x4d0] sm:$0xff]
    %v225 = vld [vmem:[#allocation3 + $0x4d8] sm:$0xff]
    %v226 = vld [vmem:[#allocation3 + $0x4e0] sm:$0xff]
    %v227 = vld [vmem:[#allocation3 + $0x4e8] sm:$0xff]
    %v228 = vld [vmem:[#allocation3 + $0x4f0] sm:$0xff]
    %v229 = vld [vmem:[#allocation3 + $0x4f8] sm:$0xff]
    %v230 = vld [vmem:[#allocation3 + $0x500] sm:$0xff]
    %v231 = vld [vmem:[#allocation3 + $0x508] sm:$0xff]
    %v232 = vld [vmem:[#allocation3 + $0x510] sm:$0xff]
    %v233 = vld [vmem:[#allocation3 + $0x518] sm:$0xff]
    %v234 = vld [vmem:[#allocation3 + $0x520] sm:$0xff]
    %v235 = vld [vmem:[#allocation3 + $0x528] sm:$0xff]
    %v236 = vld [vmem:[#allocation3 + $0x530] sm:$0xff]
    %v237 = vld [vmem:[#allocation3 + $0x538] sm:$0xff]
    %v238 = vld [vmem:[#allocation3 + $0x540] sm:$0xff]
    %v239 = vld [vmem:[#allocation3 + $0x548] sm:$0xff]
    %v240 = vld [vmem:[#allocation3 + $0x550] sm:$0xff]
    %v241 = vld [vmem:[#allocation3 + $0x558] sm:$0xff]
    %v242 = vld [vmem:[#allocation3 + $0x560] sm:$0xff]
    %v243 = vld [vmem:[#allocation3 + $0x568] sm:$0xff]
    %v244 = vld [vmem:[#allocation3 + $0x570] sm:$0xff]
    %v245 = vpack.c.bf16 %v77, %v70
    %v246 = vpack.c.bf16 %v78, %v71
    %v247 = vpack.c.bf16 %v79, %v72
    %v248 = vpack.c.bf16 %v80, %v73
    %v249 = vpack.c.bf16 %v81, %v74
    %v250 = vpack.c.bf16 %v82, %v75
    %v251 = vpack.c.bf16 %v83, %v76
    %v252 = vpack.c.bf16 %v91, %v84
    %v253 = vpack.c.bf16 %v92, %v85
    %v254 = vpack.c.bf16 %v93, %v86
    %v255 = vpack.c.bf16 %v94, %v87
    %v256 = vpack.c.bf16 %v95, %v88
    %v257 = vpack.c.bf16 %v96, %v89
    %v258 = vpack.c.bf16 %v97, %v90
    %v259 = vpack.c.bf16 %v105, %v98
    %v260 = vpack.c.bf16 %v106, %v99
    %v261 = vpack.c.bf16 %v107, %v100
    %v262 = vpack.c.bf16 %v108, %v101
    %v263 = vpack.c.bf16 %v109, %v102
    %v264 = vpack.c.bf16 %v110, %v103
    %v265 = vpack.c.bf16 %v111, %v104
    %v266 = vpack.c.bf16 %v119, %v112
    %v267 = vpack.c.bf16 %v120, %v113
    %v268 = vpack.c.bf16 %v121, %v114
    %v269 = vpack.c.bf16 %v122, %v115
    %v270 = vpack.c.bf16 %v123, %v116
    %v271 = vpack.c.bf16 %v124, %v117
    %v272 = vpack.c.bf16 %v125, %v118
    %v273 = vpack.c.bf16 %v133, %v126
    %v274 = vpack.c.bf16 %v134, %v127
    %v275 = vpack.c.bf16 %v135, %v128
    %v276 = vpack.c.bf16 %v136, %v129
    %v277 = vpack.c.bf16 %v137, %v130
    %v278 = vpack.c.bf16 %v138, %v131
    %v279 = vpack.c.bf16 %v139, %v132
    %v280 = vpack.c.bf16 %v147, %v140
    %v281 = vpack.c.bf16 %v148, %v141
    %v282 = vpack.c.bf16 %v149, %v142
    %v283 = vpack.c.bf16 %v150, %v143
    %v284 = vpack.c.bf16 %v151, %v144
    %v285 = vpack.c.bf16 %v152, %v145
    %v286 = vpack.c.bf16 %v153, %v146
    %v287 = vpack.c.bf16 %v161, %v154
    %v288 = vpack.c.bf16 %v162, %v155
    %v289 = vpack.c.bf16 %v163, %v156
    %v290 = vpack.c.bf16 %v164, %v157
    %v291 = vpack.c.bf16 %v165, %v158
    %v292 = vpack.c.bf16 %v166, %v159
    %v293 = vpack.c.bf16 %v167, %v160
    %v294 = vpack.c.bf16 %v175, %v168
    %v295 = vpack.c.bf16 %v176, %v169
    %v296 = vpack.c.bf16 %v177, %v170
    %v297 = vpack.c.bf16 %v178, %v171
    %v298 = vpack.c.bf16 %v179, %v172
    %v299 = vpack.c.bf16 %v180, %v173
    %v300 = vpack.c.bf16 %v181, %v174
    %v301 = vpack.c.bf16 %v189, %v182
    %v302 = vpack.c.bf16 %v190, %v183
    %v303 = vpack.c.bf16 %v191, %v184
    %v304 = vpack.c.bf16 %v192, %v185
    %v305 = vpack.c.bf16 %v193, %v186
    %v306 = vpack.c.bf16 %v194, %v187
    %v307 = vpack.c.bf16 %v195, %v188
    %v308 = vpack.c.bf16 %v203, %v196
    %v309 = vpack.c.bf16 %v204, %v197
    %v310 = vpack.c.bf16 %v205, %v198
    %v311 = vpack.c.bf16 %v206, %v199
    %v312 = vpack.c.bf16 %v207, %v200
    %v313 = vpack.c.bf16 %v208, %v201
    %v314 = vpack.c.bf16 %v209, %v202
    %v315 = vpack.c.bf16 %v217, %v210
    %v316 = vpack.c.bf16 %v218, %v211
    %v317 = vpack.c.bf16 %v219, %v212
    %v318 = vpack.c.bf16 %v220, %v213
    %v319 = vpack.c.bf16 %v221, %v214
    %v320 = vpack.c.bf16 %v222, %v215
    %v321 = vpack.c.bf16 %v223, %v216
    %v322 = vpack.c.bf16 %v231, %v224
    %v323 = vpack.c.bf16 %v232, %v225
    %v324 = vpack.c.bf16 %v233, %v226
    %v325 = vpack.c.bf16 %v234, %v227
    %v326 = vpack.c.bf16 %v235, %v228
    %v327 = vpack.c.bf16 %v236, %v229
    %v328 = vpack.c.bf16 %v237, %v230
    %v329 = vpack.c.bf16 %v238, %v238
    %v330 = vpack.c.bf16 %v239, %v239
    %v331 = vpack.c.bf16 %v240, %v240
    %v332 = vpack.c.bf16 %v241, %v241
    %v333 = vpack.c.bf16 %v242, %v242
    %v334 = vpack.c.bf16 %v243, %v243
    %v335 = vpack.c.bf16 %v244, %v244
    %v336 = vld [vmem:[#allocation5] sm:$0xff]
    %v337 = vld [vmem:[#allocation5 + $0x8] sm:$0xff]
    %v338 = vld [vmem:[#allocation5 + $0x10] sm:$0xff]
    %v339 = vld [vmem:[#allocation5 + $0x18] sm:$0xff]
    %v340 = vld [vmem:[#allocation5 + $0x20] sm:$0xff]
    %v341 = vld [vmem:[#allocation5 + $0x28] sm:$0xff]
    %v342 = vld [vmem:[#allocation5 + $0x30] sm:$0xff]
    %v343 = vld [vmem:[#allocation5 + $0x38] sm:$0xff]
    %v344 = vld [vmem:[#allocation5 + $0x40] sm:$0xff]
    %v345 = vld [vmem:[#allocation5 + $0x48] sm:$0xff]
    %v346 = vld [vmem:[#allocation5 + $0x50] sm:$0xff]
    %v347 = vld [vmem:[#allocation5 + $0x58] sm:$0xff]
    %v348 = vld [vmem:[#allocation5 + $0x60] sm:$0xff]
    %v349 = vld [vmem:[#allocation5 + $0x68] sm:$0xff]
    %v350 = vld [vmem:[#allocation5 + $0x70] sm:$0xff]
    %v351 = vld [vmem:[#allocation5 + $0x78] sm:$0xff]
    %v352 = vld [vmem:[#allocation5 + $0x80] sm:$0xff]
    %v353 = vld [vmem:[#allocation5 + $0x88] sm:$0xff]
    %v354 = vld [vmem:[#allocation5 + $0x90] sm:$0xff]
    %v355 = vld [vmem:[#allocation5 + $0x98] sm:$0xff]
    %v356 = vld [vmem:[#allocation5 + $0xa0] sm:$0xff]
    %v357 = vld [vmem:[#allocation5 + $0xa8] sm:$0xff]
    %v358 = vld [vmem:[#allocation5 + $0xb0] sm:$0xff]
    %v359 = vld [vmem:[#allocation5 + $0xb8] sm:$0xff]
    %v360 = vld [vmem:[#allocation5 + $0xc0] sm:$0xff]
    %v361 = vld [vmem:[#allocation5 + $0xc8] sm:$0xff]
    %v362 = vld [vmem:[#allocation5 + $0xd0] sm:$0xff]
    %v363 = vld [vmem:[#allocation5 + $0xd8] sm:$0xff]
    %v364 = vld [vmem:[#allocation5 + $0xe0] sm:$0xff]
    %v365 = vld [vmem:[#allocation5 + $0xe8] sm:$0xff]
    %v366 = vld [vmem:[#allocation5 + $0xf0] sm:$0xff]
    %v367 = vld [vmem:[#allocation5 + $0xf8] sm:$0xff]
    %v368 = vld [vmem:[#allocation5 + $0x100] sm:$0xff]
    %v369 = vld [vmem:[#allocation5 + $0x108] sm:$0xff]
    %v370 = vld [vmem:[#allocation5 + $0x110] sm:$0xff]
    %v371 = vld [vmem:[#allocation5 + $0x118] sm:$0xff]
    %v372 = vld [vmem:[#allocation5 + $0x120] sm:$0xff]
    %v373 = vld [vmem:[#allocation5 + $0x128] sm:$0xff]
    %v374 = vld [vmem:[#allocation5 + $0x130] sm:$0xff]
    %v375 = vld [vmem:[#allocation5 + $0x138] sm:$0xff]
    %v376 = vld [vmem:[#allocation5 + $0x140] sm:$0xff]
    %v377 = vld [vmem:[#allocation5 + $0x148] sm:$0xff]
    %v378 = vld [vmem:[#allocation5 + $0x150] sm:$0xff]
    %v379 = vld [vmem:[#allocation5 + $0x158] sm:$0xff]
    %v380 = vld [vmem:[#allocation5 + $0x160] sm:$0xff]
    %v381 = vld [vmem:[#allocation5 + $0x168] sm:$0xff]
    %v382 = vld [vmem:[#allocation5 + $0x170] sm:$0xff]
    %v383 = vld [vmem:[#allocation5 + $0x178] sm:$0xff]
    %v384 = vld [vmem:[#allocation5 + $0x180] sm:$0xff]
    %v385 = vld [vmem:[#allocation5 + $0x188] sm:$0xff]
    %v386 = vld [vmem:[#allocation5 + $0x190] sm:$0xff]
    %v387 = vld [vmem:[#allocation5 + $0x198] sm:$0xff]
    %v388 = vld [vmem:[#allocation5 + $0x1a0] sm:$0xff]
    %v389 = vld [vmem:[#allocation5 + $0x1a8] sm:$0xff]
    %v390 = vld [vmem:[#allocation5 + $0x1b0] sm:$0xff]
    %v391 = vld [vmem:[#allocation5 + $0x1b8] sm:$0xff]
    %v392 = vld [vmem:[#allocation5 + $0x1c0] sm:$0xff]
    %v393 = vld [vmem:[#allocation5 + $0x1c8] sm:$0xff]
    %v394 = vld [vmem:[#allocation5 + $0x1d0] sm:$0xff]
    %v395 = vld [vmem:[#allocation5 + $0x1d8] sm:$0xff]
    %v396 = vld [vmem:[#allocation5 + $0x1e0] sm:$0xff]
    %v397 = vld [vmem:[#allocation5 + $0x1e8] sm:$0xff]
    %v398 = vld [vmem:[#allocation5 + $0x1f0] sm:$0xff]
    %v399 = vld [vmem:[#allocation5 + $0x1f8] sm:$0xff]
    %v400 = vld [vmem:[#allocation5 + $0x200] sm:$0xff]
    %v401 = vld [vmem:[#allocation5 + $0x208] sm:$0xff]
    %v402 = vld [vmem:[#allocation5 + $0x210] sm:$0xff]
    %v403 = vld [vmem:[#allocation5 + $0x218] sm:$0xff]
    %v404 = vld [vmem:[#allocation5 + $0x220] sm:$0xff]
    %v405 = vld [vmem:[#allocation5 + $0x228] sm:$0xff]
    %v406 = vld [vmem:[#allocation5 + $0x230] sm:$0xff]
    %v407 = vld [vmem:[#allocation5 + $0x238] sm:$0xff]
    %v408 = vld [vmem:[#allocation5 + $0x240] sm:$0xff]
    %v409 = vld [vmem:[#allocation5 + $0x248] sm:$0xff]
    %v410 = vld [vmem:[#allocation5 + $0x250] sm:$0xff]
    %v411 = vld [vmem:[#allocation5 + $0x258] sm:$0xff]
    %v412 = vld [vmem:[#allocation5 + $0x260] sm:$0xff]
    %v413 = vld [vmem:[#allocation5 + $0x268] sm:$0xff]
    %v414 = vld [vmem:[#allocation5 + $0x270] sm:$0xff]
    %v415 = vld [vmem:[#allocation5 + $0x278] sm:$0xff]
    %v416 = vld [vmem:[#allocation5 + $0x280] sm:$0xff]
    %v417 = vld [vmem:[#allocation5 + $0x288] sm:$0xff]
    %v418 = vld [vmem:[#allocation5 + $0x290] sm:$0xff]
    %v419 = vld [vmem:[#allocation5 + $0x298] sm:$0xff]
    %v420 = vld [vmem:[#allocation5 + $0x2a0] sm:$0xff]
    %v421 = vld [vmem:[#allocation5 + $0x2a8] sm:$0xff]
    %v422 = vld [vmem:[#allocation5 + $0x2b0] sm:$0xff]
    %v423 = vld [vmem:[#allocation5 + $0x2b8] sm:$0xff]
    %v424 = vld [vmem:[#allocation5 + $0x2c0] sm:$0xff]
    %v425 = vld [vmem:[#allocation5 + $0x2c8] sm:$0xff]
    %v426 = vld [vmem:[#allocation5 + $0x2d0] sm:$0xff]
    %v427 = vld [vmem:[#allocation5 + $0x2d8] sm:$0xff]
    %v428 = vld [vmem:[#allocation5 + $0x2e0] sm:$0xff]
    %v429 = vld [vmem:[#allocation5 + $0x2e8] sm:$0xff]
    %v430 = vld [vmem:[#allocation5 + $0x2f0] sm:$0xff]
    %v431 = vld [vmem:[#allocation5 + $0x2f8] sm:$0xff]
    %v432 = vld [vmem:[#allocation5 + $0x300] sm:$0xff]
    %v433 = vld [vmem:[#allocation5 + $0x308] sm:$0xff]
    %v434 = vld [vmem:[%s2] sm:$0x3]
    %v436 = vlaneseq
    %v437 = vshrl.u32 %v436, 7
    %v438 = vsub.s32 0, %v437
    %v439 = vrot.slane %v434, %v438
    %v440 = vlaneseq
    %v441 = vshrl.u32 %v440, 7
    %v442 = vsub.s32 1, %v441
    %v443 = vrot.slane %v434, %v442
    %v544 = vunpack.c.l.b16 %v336
    %v545 = vunpack.c.h.b16 %v336
    %v546 = vunpack.c.l.b16 %v337
    %v547 = vunpack.c.h.b16 %v337
    %v548 = vunpack.c.l.b16 %v338
    %v549 = vunpack.c.h.b16 %v338
    %v550 = vunpack.c.l.b16 %v339
    %v551 = vunpack.c.h.b16 %v339
    %v552 = vunpack.c.l.b16 %v340
    %v553 = vunpack.c.h.b16 %v340
    %v554 = vunpack.c.l.b16 %v341
    %v555 = vunpack.c.h.b16 %v341
    %v556 = vunpack.c.l.b16 %v342
    %v557 = vunpack.c.h.b16 %v342
    %v558 = vunpack.c.l.b16 %v343
    %v559 = vunpack.c.h.b16 %v343
    %v560 = vunpack.c.l.b16 %v344
    %v561 = vunpack.c.h.b16 %v344
    %v562 = vunpack.c.l.b16 %v345
    %v563 = vunpack.c.h.b16 %v345
    %v564 = vunpack.c.l.b16 %v346
    %v565 = vunpack.c.h.b16 %v346
    %v566 = vunpack.c.l.b16 %v347
    %v567 = vunpack.c.h.b16 %v347
    %v568 = vunpack.c.l.b16 %v348
    %v569 = vunpack.c.h.b16 %v348
    %v570 = vunpack.c.l.b16 %v349
    %v571 = vunpack.c.h.b16 %v349
    %v572 = vunpack.c.l.b16 %v350
    %v573 = vunpack.c.h.b16 %v350
    %v574 = vunpack.c.l.b16 %v351
    %v575 = vunpack.c.h.b16 %v351
    %v576 = vunpack.c.l.b16 %v352
    %v577 = vunpack.c.h.b16 %v352
    %v578 = vunpack.c.l.b16 %v353
    %v579 = vunpack.c.h.b16 %v353
    %v580 = vunpack.c.l.b16 %v354
    %v581 = vunpack.c.h.b16 %v354
    %v582 = vunpack.c.l.b16 %v355
    %v583 = vunpack.c.h.b16 %v355
    %v584 = vunpack.c.l.b16 %v356
    %v585 = vunpack.c.h.b16 %v356
    %v586 = vunpack.c.l.b16 %v357
    %v587 = vunpack.c.h.b16 %v357
    %v588 = vunpack.c.l.b16 %v358
    %v589 = vunpack.c.h.b16 %v358
    %v590 = vunpack.c.l.b16 %v359
    %v591 = vunpack.c.h.b16 %v359
    %v592 = vunpack.c.l.b16 %v360
    %v593 = vunpack.c.h.b16 %v360
    %v594 = vunpack.c.l.b16 %v361
    %v595 = vunpack.c.h.b16 %v361
    %v596 = vunpack.c.l.b16 %v362
    %v597 = vunpack.c.h.b16 %v362
    %v598 = vunpack.c.l.b16 %v363
    %v599 = vunpack.c.h.b16 %v363
    %v600 = vunpack.c.l.b16 %v364
    %v601 = vunpack.c.h.b16 %v364
    %v602 = vunpack.c.l.b16 %v365
    %v603 = vunpack.c.h.b16 %v365
    %v604 = vunpack.c.l.b16 %v366
    %v605 = vunpack.c.h.b16 %v366
    %v606 = vunpack.c.l.b16 %v367
    %v607 = vunpack.c.h.b16 %v367
    %v608 = vunpack.c.l.b16 %v368
    %v609 = vunpack.c.h.b16 %v368
    %v610 = vunpack.c.l.b16 %v369
    %v611 = vunpack.c.h.b16 %v369
    %v612 = vunpack.c.l.b16 %v370
    %v613 = vunpack.c.h.b16 %v370
    %v614 = vunpack.c.l.b16 %v371
    %v615 = vunpack.c.h.b16 %v371
    %v616 = vunpack.c.l.b16 %v372
    %v617 = vunpack.c.h.b16 %v372
    %v618 = vunpack.c.l.b16 %v373
    %v619 = vunpack.c.h.b16 %v373
    %v620 = vunpack.c.l.b16 %v374
    %v621 = vunpack.c.h.b16 %v374
    %v622 = vunpack.c.l.b16 %v375
    %v623 = vunpack.c.h.b16 %v375
    %v624 = vunpack.c.l.b16 %v376
    %v625 = vunpack.c.h.b16 %v376
    %v626 = vunpack.c.l.b16 %v377
    %v627 = vunpack.c.h.b16 %v377
    %v628 = vunpack.c.l.b16 %v378
    %v629 = vunpack.c.h.b16 %v378
    %v630 = vunpack.c.l.b16 %v379
    %v631 = vunpack.c.h.b16 %v379
    %v632 = vunpack.c.l.b16 %v380
    %v633 = vunpack.c.h.b16 %v380
    %v634 = vunpack.c.l.b16 %v381
    %v635 = vunpack.c.h.b16 %v381
    %v636 = vunpack.c.l.b16 %v382
    %v637 = vunpack.c.h.b16 %v382
    %v638 = vunpack.c.l.b16 %v383
    %v639 = vunpack.c.h.b16 %v383
    %v640 = vunpack.c.l.b16 %v384
    %v641 = vunpack.c.h.b16 %v384
    %v642 = vunpack.c.l.b16 %v385
    %v643 = vunpack.c.h.b16 %v385
    %v644 = vunpack.c.l.b16 %v386
    %v645 = vunpack.c.h.b16 %v386
    %v646 = vunpack.c.l.b16 %v387
    %v647 = vunpack.c.h.b16 %v387
    %v648 = vunpack.c.l.b16 %v388
    %v649 = vunpack.c.h.b16 %v388
    %v650 = vunpack.c.l.b16 %v389
    %v651 = vunpack.c.h.b16 %v389
    %v652 = vunpack.c.l.b16 %v390
    %v653 = vunpack.c.h.b16 %v390
    %v654 = vunpack.c.l.b16 %v391
    %v655 = vunpack.c.h.b16 %v391
    %v656 = vunpack.c.l.b16 %v392
    %v657 = vunpack.c.h.b16 %v392
    %v658 = vunpack.c.l.b16 %v393
    %v659 = vunpack.c.h.b16 %v393
    %v660 = vunpack.c.l.b16 %v394
    %v661 = vunpack.c.h.b16 %v394
    %v662 = vunpack.c.l.b16 %v395
    %v663 = vunpack.c.h.b16 %v395
    %v664 = vunpack.c.l.b16 %v396
    %v665 = vunpack.c.h.b16 %v396
    %v666 = vunpack.c.l.b16 %v397
    %v667 = vunpack.c.h.b16 %v397
    %v668 = vunpack.c.l.b16 %v398
    %v669 = vunpack.c.h.b16 %v398
    %v670 = vunpack.c.l.b16 %v399
    %v671 = vunpack.c.h.b16 %v399
    %v672 = vunpack.c.l.b16 %v400
    %v673 = vunpack.c.h.b16 %v400
    %v674 = vunpack.c.l.b16 %v401
    %v675 = vunpack.c.h.b16 %v401
    %v676 = vunpack.c.l.b16 %v402
    %v677 = vunpack.c.h.b16 %v402
    %v678 = vunpack.c.l.b16 %v403
    %v679 = vunpack.c.h.b16 %v403
    %v680 = vunpack.c.l.b16 %v404
    %v681 = vunpack.c.h.b16 %v404
    %v682 = vunpack.c.l.b16 %v405
    %v683 = vunpack.c.h.b16 %v405
    %v684 = vunpack.c.l.b16 %v406
    %v685 = vunpack.c.h.b16 %v406
    %v686 = vunpack.c.l.b16 %v407
    %v687 = vunpack.c.h.b16 %v407
    %v688 = vunpack.c.l.b16 %v408
    %v689 = vunpack.c.h.b16 %v408
    %v690 = vunpack.c.l.b16 %v409
    %v691 = vunpack.c.h.b16 %v409
    %v692 = vunpack.c.l.b16 %v410
    %v693 = vunpack.c.h.b16 %v410
    %v694 = vunpack.c.l.b16 %v411
    %v695 = vunpack.c.h.b16 %v411
    %v696 = vunpack.c.l.b16 %v412
    %v697 = vunpack.c.h.b16 %v412
    %v698 = vunpack.c.l.b16 %v413
    %v699 = vunpack.c.h.b16 %v413
    %v700 = vunpack.c.l.b16 %v414
    %v701 = vunpack.c.h.b16 %v414
    %v702 = vunpack.c.l.b16 %v415
    %v703 = vunpack.c.h.b16 %v415
    %v704 = vunpack.c.l.b16 %v416
    %v705 = vunpack.c.h.b16 %v416
    %v706 = vunpack.c.l.b16 %v417
    %v707 = vunpack.c.h.b16 %v417
    %v708 = vunpack.c.l.b16 %v418
    %v709 = vunpack.c.h.b16 %v418
    %v710 = vunpack.c.l.b16 %v419
    %v711 = vunpack.c.h.b16 %v419
    %v712 = vunpack.c.l.b16 %v420
    %v713 = vunpack.c.h.b16 %v420
    %v714 = vunpack.c.l.b16 %v421
    %v715 = vunpack.c.h.b16 %v421
    %v716 = vunpack.c.l.b16 %v422
    %v717 = vunpack.c.h.b16 %v422
    %v718 = vunpack.c.l.b16 %v423
    %v719 = vunpack.c.h.b16 %v423
    %v720 = vunpack.c.l.b16 %v424
    %v721 = vunpack.c.h.b16 %v424
    %v722 = vunpack.c.l.b16 %v425
    %v723 = vunpack.c.h.b16 %v425
    %v724 = vunpack.c.l.b16 %v426
    %v725 = vunpack.c.h.b16 %v426
    %v726 = vunpack.c.l.b16 %v427
    %v727 = vunpack.c.h.b16 %v427
    %v728 = vunpack.c.l.b16 %v428
    %v729 = vunpack.c.h.b16 %v428
    %v730 = vunpack.c.l.b16 %v429
    %v731 = vunpack.c.h.b16 %v429
    %v732 = vunpack.c.l.b16 %v430
    %v733 = vunpack.c.h.b16 %v430
    %v734 = vunpack.c.l.b16 %v431
    %v735 = vunpack.c.h.b16 %v431
    %v736 = vunpack.c.l.b16 %v432
    %v737 = vunpack.c.h.b16 %v432
    %v738 = vunpack.c.l.b16 %v433
    %v739 = vunpack.c.h.b16 %v433
    %v740 = vpack.c.b16 %v546, %v544
    %v741 = vpack.c.b16 %v547, %v545
    %v742 = vpack.c.b16 %v550, %v548
    %v743 = vpack.c.b16 %v551, %v549
    %v744 = vpack.c.b16 %v554, %v552
    %v745 = vpack.c.b16 %v555, %v553
    %v746 = vpack.c.b16 %v558, %v556
    %v747 = vpack.c.b16 %v559, %v557
    %v748 = vpack.c.b16 %v562, %v560
    %v749 = vpack.c.b16 %v563, %v561
    %v750 = vpack.c.b16 %v566, %v564
    %v751 = vpack.c.b16 %v567, %v565
    %v752 = vpack.c.b16 %v570, %v568
    %v753 = vpack.c.b16 %v571, %v569
    %v754 = vpack.c.b16 %v574, %v572
    %v755 = vpack.c.b16 %v575, %v573
    %v756 = vpack.c.b16 %v578, %v576
    %v757 = vpack.c.b16 %v579, %v577
    %v758 = vpack.c.b16 %v582, %v580
    %v759 = vpack.c.b16 %v583, %v581
    %v760 = vpack.c.b16 %v586, %v584
    %v761 = vpack.c.b16 %v587, %v585
    %v762 = vpack.c.b16 %v590, %v588
    %v763 = vpack.c.b16 %v591, %v589
    %v764 = vpack.c.b16 %v594, %v592
    %v765 = vpack.c.b16 %v595, %v593
    %v766 = vpack.c.b16 %v598, %v596
    %v767 = vpack.c.b16 %v599, %v597
    %v768 = vpack.c.b16 %v602, %v600
    %v769 = vpack.c.b16 %v603, %v601
    %v770 = vpack.c.b16 %v606, %v604
    %v771 = vpack.c.b16 %v607, %v605
    %v772 = vpack.c.b16 %v610, %v608
    %v773 = vpack.c.b16 %v611, %v609
    %v774 = vpack.c.b16 %v614, %v612
    %v775 = vpack.c.b16 %v615, %v613
    %v776 = vpack.c.b16 %v618, %v616
    %v777 = vpack.c.b16 %v619, %v617
    %v778 = vpack.c.b16 %v622, %v620
    %v779 = vpack.c.b16 %v623, %v621
    %v780 = vpack.c.b16 %v626, %v624
    %v781 = vpack.c.b16 %v627, %v625
    %v782 = vpack.c.b16 %v630, %v628
    %v783 = vpack.c.b16 %v631, %v629
    %v784 = vpack.c.b16 %v634, %v632
    %v785 = vpack.c.b16 %v635, %v633
    %v786 = vpack.c.b16 %v638, %v636
    %v787 = vpack.c.b16 %v639, %v637
    %v788 = vpack.c.b16 %v642, %v640
    %v789 = vpack.c.b16 %v643, %v641
    %v790 = vpack.c.b16 %v646, %v644
    %v791 = vpack.c.b16 %v647, %v645
    %v792 = vpack.c.b16 %v650, %v648
    %v793 = vpack.c.b16 %v651, %v649
    %v794 = vpack.c.b16 %v654, %v652
    %v795 = vpack.c.b16 %v655, %v653
    %v796 = vpack.c.b16 %v658, %v656
    %v797 = vpack.c.b16 %v659, %v657
    %v798 = vpack.c.b16 %v662, %v660
    %v799 = vpack.c.b16 %v663, %v661
    %v800 = vpack.c.b16 %v666, %v664
    %v801 = vpack.c.b16 %v667, %v665
    %v802 = vpack.c.b16 %v670, %v668
    %v803 = vpack.c.b16 %v671, %v669
    %v804 = vpack.c.b16 %v674, %v672
    %v805 = vpack.c.b16 %v675, %v673
    %v806 = vpack.c.b16 %v678, %v676
    %v807 = vpack.c.b16 %v679, %v677
    %v808 = vpack.c.b16 %v682, %v680
    %v809 = vpack.c.b16 %v683, %v681
    %v810 = vpack.c.b16 %v686, %v684
    %v811 = vpack.c.b16 %v687, %v685
    %v812 = vpack.c.b16 %v690, %v688
    %v813 = vpack.c.b16 %v691, %v689
    %v814 = vpack.c.b16 %v694, %v692
    %v815 = vpack.c.b16 %v695, %v693
    %v816 = vpack.c.b16 %v698, %v696
    %v817 = vpack.c.b16 %v699, %v697
    %v818 = vpack.c.b16 %v702, %v700
    %v819 = vpack.c.b16 %v703, %v701
    %v820 = vpack.c.b16 %v706, %v704
    %v821 = vpack.c.b16 %v707, %v705
    %v822 = vpack.c.b16 %v710, %v708
    %v823 = vpack.c.b16 %v711, %v709
    %v824 = vpack.c.b16 %v714, %v712
    %v825 = vpack.c.b16 %v715, %v713
    %v826 = vpack.c.b16 %v718, %v716
    %v827 = vpack.c.b16 %v719, %v717
    %v828 = vpack.c.b16 %v722, %v720
    %v829 = vpack.c.b16 %v723, %v721
    %v830 = vpack.c.b16 %v726, %v724
    %v831 = vpack.c.b16 %v727, %v725
    %v832 = vpack.c.b16 %v730, %v728
    %v833 = vpack.c.b16 %v731, %v729
    %v834 = vpack.c.b16 %v734, %v732
    %v835 = vpack.c.b16 %v735, %v733
    %v836 = vpack.c.b16 %v738, %v736
    %v837 = vpack.c.b16 %v739, %v737
    %vm936 = vcmask 130048
    %v938 = vsel %vm936, %v251, 0
    %v941 = vsel %vm936, %v258, 0
    %v944 = vsel %vm936, %v265, 0
    %v947 = vsel %vm936, %v272, 0
    %v950 = vsel %vm936, %v279, 0
    %v953 = vsel %vm936, %v286, 0
    %v956 = vsel %vm936, %v293, 0
    %v959 = vsel %vm936, %v300, 0
    %v962 = vsel %vm936, %v307, 0
    %v965 = vsel %vm936, %v314, 0
    %v968 = vsel %vm936, %v321, 0
    %v971 = vsel %vm936, %v328, 0
    %v974 = vsel %vm936, %v335, 0
    %976 = vmatprep.subr.bf16.mxu0 %v741
    %977 = vmatpush1.bf16.msra.mxu0 %v740
    %978 = vmatprep.subr.bf16.mxu0 %v743
    %979 = vmatpush1.bf16.msra.mxu0 %v742
    %980 = vmatprep.subr.bf16.mxu0 %v745
    %981 = vmatpush1.bf16.msra.mxu0 %v744
    %982 = vmatprep.subr.bf16.mxu0 %v747
    %983 = vmatpush1.bf16.msra.mxu0 %v746
    %984 = vmatprep.subr.bf16.mxu0 %v749
    %985 = vmatpush1.bf16.msra.mxu0 %v748
    %986 = vmatprep.subr.bf16.mxu0 %v751
    %987 = vmatpush1.bf16.msra.mxu0 %v750
    %988 = vmatprep.subr.bf16.mxu0 %v753
    %989 = vmatpush1.bf16.msra.mxu0 %v752
    %990 = vmatprep.subr.bf16.mxu0 %v755
    %991 = vmatpush1.bf16.msra.mxu0 %v754
    %992 = vmatprep.subr.bf16.mxu0 %v757
    %993 = vmatpush1.bf16.msra.mxu0 %v756
    %994 = vmatprep.subr.bf16.mxu0 %v759
    %995 = vmatpush1.bf16.msra.mxu0 %v758
    %996 = vmatprep.subr.bf16.mxu0 %v761
    %997 = vmatpush1.bf16.msra.mxu0 %v760
    %998 = vmatprep.subr.bf16.mxu0 %v763
    %999 = vmatpush1.bf16.msra.mxu0 %v762
    %1000 = vmatprep.subr.bf16.mxu0 %v765
    %1001 = vmatpush1.bf16.msra.mxu0 %v764
    %1002 = vmatprep.subr.bf16.mxu0 %v767
    %1003 = vmatpush1.bf16.msra.mxu0 %v766
    %1004 = vmatprep.subr.bf16.mxu0 %v769
    %1005 = vmatpush1.bf16.msra.mxu0 %v768
    %1006 = vmatprep.subr.bf16.mxu0 %v771
    %1007 = vmatpush1.bf16.msra.mxu0 %v770
    %1008 = vmatprep.mubr.bf16.mxu0 %v246
    %1009 = vmatmul.mubr.bf16.gmra.mrb[0].mxu0 %v245
    %v1010 = vpop.f32.mrb[0].mxu0
    %v1011 = vadd.f32 %v439, %v1010
    %v1012 = vpop.f32.mrb[0].mxu0
    %v1013 = vadd.f32 %v443, %v1012
    %v1014 = vpop.f32.mrb[0].mxu0
    %v1015 = vadd.f32 %v439, %v1014
    %v1016 = vpop.f32.mrb[0].mxu0
    %v1017 = vadd.f32 %v443, %v1016
    %1018 = vmatprep.mubr.bf16.mxu0 %v253
    %1019 = vmatmul.mubr.bf16.gmra.mrb[0].mxu0 %v252
    %v1020 = vpop.f32.mrb[0].mxu0
    %v1021 = vadd.f32 %v439, %v1020
    %v1022 = vpop.f32.mrb[0].mxu0
    %v1023 = vadd.f32 %v443, %v1022
    %v1024 = vpop.f32.mrb[0].mxu0
    %v1025 = vadd.f32 %v439, %v1024
    %v1026 = vpop.f32.mrb[0].mxu0
    %v1027 = vadd.f32 %v443, %v1026
    %1028 = vmatprep.mubr.bf16.mxu0 %v260
    %1029 = vmatmul.mubr.bf16.gmra.mrb[0].mxu0 %v259
    %v1030 = vpop.f32.mrb[0].mxu0
    %v1031 = vadd.f32 %v439, %v1030
    %v1032 = vpop.f32.mrb[0].mxu0
    %v1033 = vadd.f32 %v443, %v1032
    %v1034 = vpop.f32.mrb[0].mxu0
    %v1035 = vadd.f32 %v439, %v1034
    %v1036 = vpop.f32.mrb[0].mxu0
    %v1037 = vadd.f32 %v443, %v1036
    %1038 = vmatprep.mubr.bf16.mxu0 %v267
    %1039 = vmatmul.mubr.bf16.gmra.mrb[0].mxu0 %v266
    %v1040 = vpop.f32.mrb[0].mxu0
    %v1041 = vadd.f32 %v439, %v1040
    %v1042 = vpop.f32.mrb[0].mxu0
    %v1043 = vadd.f32 %v443, %v1042
    %v1044 = vpop.f32.mrb[0].mxu0
    %v1045 = vadd.f32 %v439, %v1044
    %v1046 = vpop.f32.mrb[0].mxu0
    %v1047 = vadd.f32 %v443, %v1046
    %1048 = vmatprep.mubr.bf16.mxu0 %v274
    %1049 = vmatmul.mubr.bf16.gmra.mrb[0].mxu0 %v273
    %v1050 = vpop.f32.mrb[0].mxu0
    %v1051 = vadd.f32 %v439, %v1050
    %v1052 = vpop.f32.mrb[0].mxu0
    %v1053 = vadd.f32 %v443, %v1052
    %v1054 = vpop.f32.mrb[0].mxu0
    %v1055 = vadd.f32 %v439, %v1054
    %v1056 = vpop.f32.mrb[0].mxu0
    %v1057 = vadd.f32 %v443, %v1056
    %1058 = vmatprep.mubr.bf16.mxu0 %v281
    %1059 = vmatmul.mubr.bf16.gmra.mrb[0].mxu0 %v280
    %v1060 = vpop.f32.mrb[0].mxu0
    %v1061 = vadd.f32 %v439, %v1060
    %v1062 = vpop.f32.mrb[0].mxu0
    %v1063 = vadd.f32 %v443, %v1062
    %v1064 = vpop.f32.mrb[0].mxu0
    %v1065 = vadd.f32 %v439, %v1064
    %v1066 = vpop.f32.mrb[0].mxu0
    %v1067 = vadd.f32 %v443, %v1066
    %1068 = vmatprep.mubr.bf16.mxu0 %v288
    %1069 = vmatmul.mubr.bf16.gmra.mrb[0].mxu0 %v287
    %v1070 = vpop.f32.mrb[0].mxu0
    %v1071 = vadd.f32 %v439, %v1070
    %v1072 = vpop.f32.mrb[0].mxu0
    %v1073 = vadd.f32 %v443, %v1072
    %v1074 = vpop.f32.mrb[0].mxu0
    %v1075 = vadd.f32 %v439, %v1074
    %v1076 = vpop.f32.mrb[0].mxu0
    %v1077 = vadd.f32 %v443, %v1076
    %1078 = vmatprep.mubr.bf16.mxu0 %v295
    %1079 = vmatmul.mubr.bf16.gmra.mrb[0].mxu0 %v294
    %v1080 = vpop.f32.mrb[0].mxu0
    %v1081 = vadd.f32 %v439, %v1080
    %v1082 = vpop.f32.mrb[0].mxu0
    %v1083 = vadd.f32 %v443, %v1082
    %v1084 = vpop.f32.mrb[0].mxu0
    %v1085 = vadd.f32 %v439, %v1084
    %v1086 = vpop.f32.mrb[0].mxu0
    %v1087 = vadd.f32 %v443, %v1086
    %1088 = vmatprep.mubr.bf16.mxu0 %v302
    %1089 = vmatmul.mubr.bf16.gmra.mrb[0].mxu0 %v301
    %v1090 = vpop.f32.mrb[0].mxu0
    %v1091 = vadd.f32 %v439, %v1090
    %v1092 = vpop.f32.mrb[0].mxu0
    %v1093 = vadd.f32 %v443, %v1092
    %v1094 = vpop.f32.mrb[0].mxu0
    %v1095 = vadd.f32 %v439, %v1094
    %v1096 = vpop.f32.mrb[0].mxu0
    %v1097 = vadd.f32 %v443, %v1096
    %1098 = vmatprep.mubr.bf16.mxu0 %v309
    %1099 = vmatmul.mubr.bf16.gmra.mrb[0].mxu0 %v308
    %v1100 = vpop.f32.mrb[0].mxu0
    %v1101 = vadd.f32 %v439, %v1100
    %v1102 = vpop.f32.mrb[0].mxu0
    %v1103 = vadd.f32 %v443, %v1102
    %v1104 = vpop.f32.mrb[0].mxu0
    %v1105 = vadd.f32 %v439, %v1104
    %v1106 = vpop.f32.mrb[0].mxu0
    %v1107 = vadd.f32 %v443, %v1106
    %1108 = vmatprep.mubr.bf16.mxu0 %v316
    %1109 = vmatmul.mubr.bf16.gmra.mrb[0].mxu0 %v315
    %v1110 = vpop.f32.mrb[0].mxu0
    %v1111 = vadd.f32 %v439, %v1110
    %v1112 = vpop.f32.mrb[0].mxu0
    %v1113 = vadd.f32 %v443, %v1112
    %v1114 = vpop.f32.mrb[0].mxu0
    %v1115 = vadd.f32 %v439, %v1114
    %v1116 = vpop.f32.mrb[0].mxu0
    %v1117 = vadd.f32 %v443, %v1116
    %1118 = vmatprep.mubr.bf16.mxu0 %v323
    %1119 = vmatmul.mubr.bf16.gmra.mrb[0].mxu0 %v322
    %v1120 = vpop.f32.mrb[0].mxu0
    %v1121 = vadd.f32 %v439, %v1120
    %v1122 = vpop.f32.mrb[0].mxu0
    %v1123 = vadd.f32 %v443, %v1122
    %v1124 = vpop.f32.mrb[0].mxu0
    %v1125 = vadd.f32 %v439, %v1124
    %v1126 = vpop.f32.mrb[0].mxu0
    %v1127 = vadd.f32 %v443, %v1126
    %1128 = vmatprep.mubr.bf16.mxu0 %v330
    %1129 = vmatmul.mubr.bf16.gmra.mrb[0].mxu0 %v329
    %v1130 = vpop.f32.mrb[0].mxu0
    %v1131 = vadd.f32 %v439, %v1130
    %v1132 = vpop.f32.mrb[0].mxu0
    %v1133 = vadd.f32 %v443, %v1132
    %v1134 = vpop.f32.mrb[0].mxu0
    %v1135 = vpop.f32.mrb[0].mxu0
    %1136 = vdwg.mxu0
    %1137 = vmatprep.subr.bf16.mxu0 %v773
    %1138 = vmatpush1.bf16.msra.mxu0 %v772
    %1139 = vmatprep.subr.bf16.mxu0 %v775
    %1140 = vmatpush1.bf16.msra.mxu0 %v774
    %1141 = vmatprep.subr.bf16.mxu0 %v777
    %1142 = vmatpush1.bf16.msra.mxu0 %v776
    %1143 = vmatprep.subr.bf16.mxu0 %v779
    %1144 = vmatpush1.bf16.msra.mxu0 %v778
    %1145 = vmatprep.subr.bf16.mxu0 %v781
    %1146 = vmatpush1.bf16.msra.mxu0 %v780
    %1147 = vmatprep.subr.bf16.mxu0 %v783
    %1148 = vmatpush1.bf16.msra.mxu0 %v782
    %1149 = vmatprep.subr.bf16.mxu0 %v785
    %1150 = vmatpush1.bf16.msra.mxu0 %v784
    %1151 = vmatprep.subr.bf16.mxu0 %v787
    %1152 = vmatpush1.bf16.msra.mxu0 %v786
    %1153 = vmatprep.subr.bf16.mxu0 %v789
    %1154 = vmatpush1.bf16.msra.mxu0 %v788
    %1155 = vmatprep.subr.bf16.mxu0 %v791
    %1156 = vmatpush1.bf16.msra.mxu0 %v790
    %1157 = vmatprep.subr.bf16.mxu0 %v793
    %1158 = vmatpush1.bf16.msra.mxu0 %v792
    %1159 = vmatprep.subr.bf16.mxu0 %v795
    %1160 = vmatpush1.bf16.msra.mxu0 %v794
    %1161 = vmatprep.subr.bf16.mxu0 %v797
    %1162 = vmatpush1.bf16.msra.mxu0 %v796
    %1163 = vmatprep.subr.bf16.mxu0 %v799
    %1164 = vmatpush1.bf16.msra.mxu0 %v798
    %1165 = vmatprep.subr.bf16.mxu0 %v801
    %1166 = vmatpush1.bf16.msra.mxu0 %v800
    %1167 = vmatprep.subr.bf16.mxu0 %v803
    %1168 = vmatpush1.bf16.msra.mxu0 %v802
    %1169 = vmatprep.mubr.bf16.mxu0 %v248
    %1170 = vmatmul.mubr.bf16.gmra.mrb[0].mxu0 %v247
    %v1171 = vpop.f32.mrb[0].mxu0
    %v1172 = vadd.f32 %v1011, %v1171
    %v1173 = vpop.f32.mrb[0].mxu0
    %v1174 = vadd.f32 %v1013, %v1173
    %v1175 = vpop.f32.mrb[0].mxu0
    %v1176 = vadd.f32 %v1015, %v1175
    %v1177 = vpop.f32.mrb[0].mxu0
    %v1178 = vadd.f32 %v1017, %v1177
    %1179 = vmatprep.mubr.bf16.mxu0 %v255
    %1180 = vmatmul.mubr.bf16.gmra.mrb[0].mxu0 %v254
    %v1181 = vpop.f32.mrb[0].mxu0
    %v1182 = vadd.f32 %v1021, %v1181
    %v1183 = vpop.f32.mrb[0].mxu0
    %v1184 = vadd.f32 %v1023, %v1183
    %v1185 = vpop.f32.mrb[0].mxu0
    %v1186 = vadd.f32 %v1025, %v1185
    %v1187 = vpop.f32.mrb[0].mxu0
    %v1188 = vadd.f32 %v1027, %v1187
    %1189 = vmatprep.mubr.bf16.mxu0 %v262
    %1190 = vmatmul.mubr.bf16.gmra.mrb[0].mxu0 %v261
    %v1191 = vpop.f32.mrb[0].mxu0
    %v1192 = vadd.f32 %v1031, %v1191
    %v1193 = vpop.f32.mrb[0].mxu0
    %v1194 = vadd.f32 %v1033, %v1193
    %v1195 = vpop.f32.mrb[0].mxu0
    %v1196 = vadd.f32 %v1035, %v1195
    %v1197 = vpop.f32.mrb[0].mxu0
    %v1198 = vadd.f32 %v1037, %v1197
    %1199 = vmatprep.mubr.bf16.mxu0 %v269
    %1200 = vmatmul.mubr.bf16.gmra.mrb[0].mxu0 %v268
    %v1201 = vpop.f32.mrb[0].mxu0
    %v1202 = vadd.f32 %v1041, %v1201
    %v1203 = vpop.f32.mrb[0].mxu0
    %v1204 = vadd.f32 %v1043, %v1203
    %v1205 = vpop.f32.mrb[0].mxu0
    %v1206 = vadd.f32 %v1045, %v1205
    %v1207 = vpop.f32.mrb[0].mxu0
    %v1208 = vadd.f32 %v1047, %v1207
    %1209 = vmatprep.mubr.bf16.mxu0 %v276
    %1210 = vmatmul.mubr.bf16.gmra.mrb[0].mxu0 %v275
    %v1211 = vpop.f32.mrb[0].mxu0
    %v1212 = vadd.f32 %v1051, %v1211
    %v1213 = vpop.f32.mrb[0].mxu0
    %v1214 = vadd.f32 %v1053, %v1213
    %v1215 = vpop.f32.mrb[0].mxu0
    %v1216 = vadd.f32 %v1055, %v1215
    %v1217 = vpop.f32.mrb[0].mxu0
    %v1218 = vadd.f32 %v1057, %v1217
    %1219 = vmatprep.mubr.bf16.mxu0 %v283
    %1220 = vmatmul.mubr.bf16.gmra.mrb[0].mxu0 %v282
    %v1221 = vpop.f32.mrb[0].mxu0
    %v1222 = vadd.f32 %v1061, %v1221
    %v1223 = vpop.f32.mrb[0].mxu0
    %v1224 = vadd.f32 %v1063, %v1223
    %v1225 = vpop.f32.mrb[0].mxu0
    %v1226 = vadd.f32 %v1065, %v1225
    %v1227 = vpop.f32.mrb[0].mxu0
    %v1228 = vadd.f32 %v1067, %v1227
    %1229 = vmatprep.mubr.bf16.mxu0 %v290
    %1230 = vmatmul.mubr.bf16.gmra.mrb[0].mxu0 %v289
    %v1231 = vpop.f32.mrb[0].mxu0
    %v1232 = vadd.f32 %v1071, %v1231
    %v1233 = vpop.f32.mrb[0].mxu0
    %v1234 = vadd.f32 %v1073, %v1233
    %v1235 = vpop.f32.mrb[0].mxu0
    %v1236 = vadd.f32 %v1075, %v1235
    %v1237 = vpop.f32.mrb[0].mxu0
    %v1238 = vadd.f32 %v1077, %v1237
    %1239 = vmatprep.mubr.bf16.mxu0 %v297
    %1240 = vmatmul.mubr.bf16.gmra.mrb[0].mxu0 %v296
    %v1241 = vpop.f32.mrb[0].mxu0
    %v1242 = vadd.f32 %v1081, %v1241
    %v1243 = vpop.f32.mrb[0].mxu0
    %v1244 = vadd.f32 %v1083, %v1243
    %v1245 = vpop.f32.mrb[0].mxu0
    %v1246 = vadd.f32 %v1085, %v1245
    %v1247 = vpop.f32.mrb[0].mxu0
    %v1248 = vadd.f32 %v1087, %v1247
    %1249 = vmatprep.mubr.bf16.mxu0 %v304
    %1250 = vmatmul.mubr.bf16.gmra.mrb[0].mxu0 %v303
    %v1251 = vpop.f32.mrb[0].mxu0
    %v1252 = vadd.f32 %v1091, %v1251
    %v1253 = vpop.f32.mrb[0].mxu0
    %v1254 = vadd.f32 %v1093, %v1253
    %v1255 = vpop.f32.mrb[0].mxu0
    %v1256 = vadd.f32 %v1095, %v1255
    %v1257 = vpop.f32.mrb[0].mxu0
    %v1258 = vadd.f32 %v1097, %v1257
    %1259 = vmatprep.mubr.bf16.mxu0 %v311
    %1260 = vmatmul.mubr.bf16.gmra.mrb[0].mxu0 %v310
    %v1261 = vpop.f32.mrb[0].mxu0
    %v1262 = vadd.f32 %v1101, %v1261
    %v1263 = vpop.f32.mrb[0].mxu0
    %v1264 = vadd.f32 %v1103, %v1263
    %v1265 = vpop.f32.mrb[0].mxu0
    %v1266 = vadd.f32 %v1105, %v1265
    %v1267 = vpop.f32.mrb[0].mxu0
    %v1268 = vadd.f32 %v1107, %v1267
    %1269 = vmatprep.mubr.bf16.mxu0 %v318
    %1270 = vmatmul.mubr.bf16.gmra.mrb[0].mxu0 %v317
    %v1271 = vpop.f32.mrb[0].mxu0
    %v1272 = vadd.f32 %v1111, %v1271
    %v1273 = vpop.f32.mrb[0].mxu0
    %v1274 = vadd.f32 %v1113, %v1273
    %v1275 = vpop.f32.mrb[0].mxu0
    %v1276 = vadd.f32 %v1115, %v1275
    %v1277 = vpop.f32.mrb[0].mxu0
    %v1278 = vadd.f32 %v1117, %v1277
    %1279 = vmatprep.mubr.bf16.mxu0 %v325
    %1280 = vmatmul.mubr.bf16.gmra.mrb[0].mxu0 %v324
    %v1281 = vpop.f32.mrb[0].mxu0
    %v1282 = vadd.f32 %v1121, %v1281
    %v1283 = vpop.f32.mrb[0].mxu0
    %v1284 = vadd.f32 %v1123, %v1283
    %v1285 = vpop.f32.mrb[0].mxu0
    %v1286 = vadd.f32 %v1125, %v1285
    %v1287 = vpop.f32.mrb[0].mxu0
    %v1288 = vadd.f32 %v1127, %v1287
    %1289 = vmatprep.mubr.bf16.mxu0 %v332
    %1290 = vmatmul.mubr.bf16.gmra.mrb[0].mxu0 %v331
    %v1291 = vpop.f32.mrb[0].mxu0
    %v1292 = vadd.f32 %v1131, %v1291
    %v1293 = vpop.f32.mrb[0].mxu0
    %v1294 = vadd.f32 %v1133, %v1293
    %v1295 = vpop.f32.mrb[0].mxu0
    %v1296 = vpop.f32.mrb[0].mxu0
    %1297 = vdwg.mxu0
    %1298 = vmatprep.subr.bf16.mxu0 %v805
    %1299 = vmatpush1.bf16.msra.mxu0 %v804
    %1300 = vmatprep.subr.bf16.mxu0 %v807
    %1301 = vmatpush1.bf16.msra.mxu0 %v806
    %1302 = vmatprep.subr.bf16.mxu0 %v809
    %1303 = vmatpush1.bf16.msra.mxu0 %v808
    %1304 = vmatprep.subr.bf16.mxu0 %v811
    %1305 = vmatpush1.bf16.msra.mxu0 %v810
    %1306 = vmatprep.subr.bf16.mxu0 %v813
    %1307 = vmatpush1.bf16.msra.mxu0 %v812
    %1308 = vmatprep.subr.bf16.mxu0 %v815
    %1309 = vmatpush1.bf16.msra.mxu0 %v814
    %1310 = vmatprep.subr.bf16.mxu0 %v817
    %1311 = vmatpush1.bf16.msra.mxu0 %v816
    %1312 = vmatprep.subr.bf16.mxu0 %v819
    %1313 = vmatpush1.bf16.msra.mxu0 %v818
    %1314 = vmatprep.subr.bf16.mxu0 %v821
    %1315 = vmatpush1.bf16.msra.mxu0 %v820
    %1316 = vmatprep.subr.bf16.mxu0 %v823
    %1317 = vmatpush1.bf16.msra.mxu0 %v822
    %1318 = vmatprep.subr.bf16.mxu0 %v825
    %1319 = vmatpush1.bf16.msra.mxu0 %v824
    %1320 = vmatprep.subr.bf16.mxu0 %v827
    %1321 = vmatpush1.bf16.msra.mxu0 %v826
    %1322 = vmatprep.subr.bf16.mxu0 %v829
    %1323 = vmatpush1.bf16.msra.mxu0 %v828
    %1324 = vmatprep.subr.bf16.mxu0 %v831
    %1325 = vmatpush1.bf16.msra.mxu0 %v830
    %1326 = vmatprep.subr.bf16.mxu0 %v833
    %1327 = vmatpush1.bf16.msra.mxu0 %v832
    %1328 = vmatprep.subr.bf16.mxu0 %v835
    %1329 = vmatpush1.bf16.msra.mxu0 %v834
    %1330 = vmatprep.mubr.bf16.mxu0 %v250
    %1331 = vmatmul.mubr.bf16.gmra.mrb[0].mxu0 %v249
    %v1332 = vpop.f32.mrb[0].mxu0
    %v1333 = vadd.f32 %v1172, %v1332
    %v1334 = vpop.f32.mrb[0].mxu0
    %v1335 = vadd.f32 %v1174, %v1334
    %v1336 = vpop.f32.mrb[0].mxu0
    %v1337 = vadd.f32 %v1176, %v1336
    %v1338 = vpop.f32.mrb[0].mxu0
    %v1339 = vadd.f32 %v1178, %v1338
    %1340 = vmatprep.mubr.bf16.mxu0 %v257
    %1341 = vmatmul.mubr.bf16.gmra.mrb[0].mxu0 %v256
    %v1342 = vpop.f32.mrb[0].mxu0
    %v1343 = vadd.f32 %v1182, %v1342
    %v1344 = vpop.f32.mrb[0].mxu0
    %v1345 = vadd.f32 %v1184, %v1344
    %v1346 = vpop.f32.mrb[0].mxu0
    %v1347 = vadd.f32 %v1186, %v1346
    %v1348 = vpop.f32.mrb[0].mxu0
    %v1349 = vadd.f32 %v1188, %v1348
    %1350 = vmatprep.mubr.bf16.mxu0 %v264
    %1351 = vmatmul.mubr.bf16.gmra.mrb[0].mxu0 %v263
    %v1352 = vpop.f32.mrb[0].mxu0
    %v1353 = vadd.f32 %v1192, %v1352
    %v1354 = vpop.f32.mrb[0].mxu0
    %v1355 = vadd.f32 %v1194, %v1354
    %v1356 = vpop.f32.mrb[0].mxu0
    %v1357 = vadd.f32 %v1196, %v1356
    %v1358 = vpop.f32.mrb[0].mxu0
    %v1359 = vadd.f32 %v1198, %v1358
    %1360 = vmatprep.mubr.bf16.mxu0 %v271
    %1361 = vmatmul.mubr.bf16.gmra.mrb[0].mxu0 %v270
    %v1362 = vpop.f32.mrb[0].mxu0
    %v1363 = vadd.f32 %v1202, %v1362
    %v1364 = vpop.f32.mrb[0].mxu0
    %v1365 = vadd.f32 %v1204, %v1364
    %v1366 = vpop.f32.mrb[0].mxu0
    %v1367 = vadd.f32 %v1206, %v1366
    %v1368 = vpop.f32.mrb[0].mxu0
    %v1369 = vadd.f32 %v1208, %v1368
    %1370 = vmatprep.mubr.bf16.mxu0 %v278
    %1371 = vmatmul.mubr.bf16.gmra.mrb[0].mxu0 %v277
    %v1372 = vpop.f32.mrb[0].mxu0
    %v1373 = vadd.f32 %v1212, %v1372
    %v1374 = vpop.f32.mrb[0].mxu0
    %v1375 = vadd.f32 %v1214, %v1374
    %v1376 = vpop.f32.mrb[0].mxu0
    %v1377 = vadd.f32 %v1216, %v1376
    %v1378 = vpop.f32.mrb[0].mxu0
    %v1379 = vadd.f32 %v1218, %v1378
    %1380 = vmatprep.mubr.bf16.mxu0 %v285
    %1381 = vmatmul.mubr.bf16.gmra.mrb[0].mxu0 %v284
    %v1382 = vpop.f32.mrb[0].mxu0
    %v1383 = vadd.f32 %v1222, %v1382
    %v1384 = vpop.f32.mrb[0].mxu0
    %v1385 = vadd.f32 %v1224, %v1384
    %v1386 = vpop.f32.mrb[0].mxu0
    %v1387 = vadd.f32 %v1226, %v1386
    %v1388 = vpop.f32.mrb[0].mxu0
    %v1389 = vadd.f32 %v1228, %v1388
    %1390 = vmatprep.mubr.bf16.mxu0 %v292
    %1391 = vmatmul.mubr.bf16.gmra.mrb[0].mxu0 %v291
    %v1392 = vpop.f32.mrb[0].mxu0
    %v1393 = vadd.f32 %v1232, %v1392
    %v1394 = vpop.f32.mrb[0].mxu0
    %v1395 = vadd.f32 %v1234, %v1394
    %v1396 = vpop.f32.mrb[0].mxu0
    %v1397 = vadd.f32 %v1236, %v1396
    %v1398 = vpop.f32.mrb[0].mxu0
    %v1399 = vadd.f32 %v1238, %v1398
    %1400 = vmatprep.mubr.bf16.mxu0 %v299
    %1401 = vmatmul.mubr.bf16.gmra.mrb[0].mxu0 %v298
    %v1402 = vpop.f32.mrb[0].mxu0
    %v1403 = vadd.f32 %v1242, %v1402
    %v1404 = vpop.f32.mrb[0].mxu0
    %v1405 = vadd.f32 %v1244, %v1404
    %v1406 = vpop.f32.mrb[0].mxu0
    %v1407 = vadd.f32 %v1246, %v1406
    %v1408 = vpop.f32.mrb[0].mxu0
    %v1409 = vadd.f32 %v1248, %v1408
    %1410 = vmatprep.mubr.bf16.mxu0 %v306
    %1411 = vmatmul.mubr.bf16.gmra.mrb[0].mxu0 %v305
    %v1412 = vpop.f32.mrb[0].mxu0
    %v1413 = vadd.f32 %v1252, %v1412
    %v1414 = vpop.f32.mrb[0].mxu0
    %v1415 = vadd.f32 %v1254, %v1414
    %v1416 = vpop.f32.mrb[0].mxu0
    %v1417 = vadd.f32 %v1256, %v1416
    %v1418 = vpop.f32.mrb[0].mxu0
    %v1419 = vadd.f32 %v1258, %v1418
    %1420 = vmatprep.mubr.bf16.mxu0 %v313
    %1421 = vmatmul.mubr.bf16.gmra.mrb[0].mxu0 %v312
    %v1422 = vpop.f32.mrb[0].mxu0
    %v1423 = vadd.f32 %v1262, %v1422
    %v1424 = vpop.f32.mrb[0].mxu0
    %v1425 = vadd.f32 %v1264, %v1424
    %v1426 = vpop.f32.mrb[0].mxu0
    %v1427 = vadd.f32 %v1266, %v1426
    %v1428 = vpop.f32.mrb[0].mxu0
    %v1429 = vadd.f32 %v1268, %v1428
    %1430 = vmatprep.mubr.bf16.mxu0 %v320
    %1431 = vmatmul.mubr.bf16.gmra.mrb[0].mxu0 %v319
    %v1432 = vpop.f32.mrb[0].mxu0
    %v1433 = vadd.f32 %v1272, %v1432
    %v1434 = vpop.f32.mrb[0].mxu0
    %v1435 = vadd.f32 %v1274, %v1434
    %v1436 = vpop.f32.mrb[0].mxu0
    %v1437 = vadd.f32 %v1276, %v1436
    %v1438 = vpop.f32.mrb[0].mxu0
    %v1439 = vadd.f32 %v1278, %v1438
    %1440 = vmatprep.mubr.bf16.mxu0 %v327
    %1441 = vmatmul.mubr.bf16.gmra.mrb[0].mxu0 %v326
    %v1442 = vpop.f32.mrb[0].mxu0
    %v1443 = vadd.f32 %v1282, %v1442
    %v1444 = vpop.f32.mrb[0].mxu0
    %v1445 = vadd.f32 %v1284, %v1444
    %v1446 = vpop.f32.mrb[0].mxu0
    %v1447 = vadd.f32 %v1286, %v1446
    %v1448 = vpop.f32.mrb[0].mxu0
    %v1449 = vadd.f32 %v1288, %v1448
    %1450 = vmatprep.mubr.bf16.mxu0 %v334
    %1451 = vmatmul.mubr.bf16.gmra.mrb[0].mxu0 %v333
    %v1452 = vpop.f32.mrb[0].mxu0
    %v1453 = vadd.f32 %v1292, %v1452
    %v1454 = vpop.f32.mrb[0].mxu0
    %v1455 = vadd.f32 %v1294, %v1454
    %v1456 = vpop.f32.mrb[0].mxu0
    %v1457 = vpop.f32.mrb[0].mxu0
    %1458 = vdwg.mxu0
    %1459 = vmatprep.subr.bf16.mxu0 %v837
    %1460 = vmatpush1.bf16.msra.mxu0 %v836
    %1461 = vmatprep.subr.bf16.mxu0 0
    %1462 = vmatpush1.bf16.msra.mxu0 0
    %1463 = vmatprep.subr.bf16.mxu0 0
    %1464 = vmatpush1.bf16.msra.mxu0 0
    %1465 = vmatprep.subr.bf16.mxu0 0
    %1466 = vmatpush1.bf16.msra.mxu0 0
    %1467 = vmatprep.subr.bf16.mxu0 0
    %1468 = vmatpush1.bf16.msra.mxu0 0
    %1469 = vmatprep.subr.bf16.mxu0 0
    %1470 = vmatpush1.bf16.msra.mxu0 0
    %1471 = vmatprep.subr.bf16.mxu0 0
    %1472 = vmatpush1.bf16.msra.mxu0 0
    %1473 = vmatprep.subr.bf16.mxu0 0
    %1474 = vmatpush1.bf16.msra.mxu0 0
    %1475 = vmatprep.subr.bf16.mxu0 0
    %1476 = vmatpush1.bf16.msra.mxu0 0
    %1477 = vmatprep.subr.bf16.mxu0 0
    %1478 = vmatpush1.bf16.msra.mxu0 0
    %1479 = vmatprep.subr.bf16.mxu0 0
    %1480 = vmatpush1.bf16.msra.mxu0 0
    %1481 = vmatprep.subr.bf16.mxu0 0
    %1482 = vmatpush1.bf16.msra.mxu0 0
    %1483 = vmatprep.subr.bf16.mxu0 0
    %1484 = vmatpush1.bf16.msra.mxu0 0
    %1485 = vmatprep.subr.bf16.mxu0 0
    %1486 = vmatpush1.bf16.msra.mxu0 0
    %1487 = vmatprep.subr.bf16.mxu0 0
    %1488 = vmatpush1.bf16.msra.mxu0 0
    %1489 = vmatprep.subr.bf16.mxu0 0
    %1490 = vmatpush1.bf16.msra.mxu0 0
    %1491 = vmatprep.mubr.bf16.mxu0 0
    %1492 = vmatmul.mubr.bf16.gmra.mrb[0].mxu0 %v938
    %v1493 = vpop.f32.mrb[0].mxu0
    %v1494 = vadd.f32 %v1333, %v1493
    %v1495 = vpop.f32.mrb[0].mxu0
    %v1496 = vadd.f32 %v1335, %v1495
    %v1497 = vpop.f32.mrb[0].mxu0
    %v1498 = vadd.f32 %v1337, %v1497
    %v1499 = vpop.f32.mrb[0].mxu0
    %v1500 = vadd.f32 %v1339, %v1499
    %1501 = vmatprep.mubr.bf16.mxu0 0
    %1502 = vmatmul.mubr.bf16.gmra.mrb[0].mxu0 %v941
    %v1503 = vpop.f32.mrb[0].mxu0
    %v1504 = vadd.f32 %v1343, %v1503
    %v1505 = vpop.f32.mrb[0].mxu0
    %v1506 = vadd.f32 %v1345, %v1505
    %v1507 = vpop.f32.mrb[0].mxu0
    %v1508 = vadd.f32 %v1347, %v1507
    %v1509 = vpop.f32.mrb[0].mxu0
    %v1510 = vadd.f32 %v1349, %v1509
    %1511 = vmatprep.mubr.bf16.mxu0 0
    %1512 = vmatmul.mubr.bf16.gmra.mrb[0].mxu0 %v944
    %v1513 = vpop.f32.mrb[0].mxu0
    %v1514 = vadd.f32 %v1353, %v1513
    %v1515 = vpop.f32.mrb[0].mxu0
    %v1516 = vadd.f32 %v1355, %v1515
    %v1517 = vpop.f32.mrb[0].mxu0
    %v1518 = vadd.f32 %v1357, %v1517
    %v1519 = vpop.f32.mrb[0].mxu0
    %v1520 = vadd.f32 %v1359, %v1519
    %1521 = vmatprep.mubr.bf16.mxu0 0
    %1522 = vmatmul.mubr.bf16.gmra.mrb[0].mxu0 %v947
    %v1523 = vpop.f32.mrb[0].mxu0
    %v1524 = vadd.f32 %v1363, %v1523
    %v1525 = vpop.f32.mrb[0].mxu0
    %v1526 = vadd.f32 %v1365, %v1525
    %v1527 = vpop.f32.mrb[0].mxu0
    %v1528 = vadd.f32 %v1367, %v1527
    %v1529 = vpop.f32.mrb[0].mxu0
    %v1530 = vadd.f32 %v1369, %v1529
    %1531 = vmatprep.mubr.bf16.mxu0 0
    %1532 = vmatmul.mubr.bf16.gmra.mrb[0].mxu0 %v950
    %v1533 = vpop.f32.mrb[0].mxu0
    %v1534 = vadd.f32 %v1373, %v1533
    %v1535 = vpop.f32.mrb[0].mxu0
    %v1536 = vadd.f32 %v1375, %v1535
    %v1537 = vpop.f32.mrb[0].mxu0
    %v1538 = vadd.f32 %v1377, %v1537
    %v1539 = vpop.f32.mrb[0].mxu0
    %v1540 = vadd.f32 %v1379, %v1539
    %1541 = vmatprep.mubr.bf16.mxu0 0
    %1542 = vmatmul.mubr.bf16.gmra.mrb[0].mxu0 %v953
    %v1543 = vpop.f32.mrb[0].mxu0
    %v1544 = vadd.f32 %v1383, %v1543
    %v1545 = vpop.f32.mrb[0].mxu0
    %v1546 = vadd.f32 %v1385, %v1545
    %v1547 = vpop.f32.mrb[0].mxu0
    %v1548 = vadd.f32 %v1387, %v1547
    %v1549 = vpop.f32.mrb[0].mxu0
    %v1550 = vadd.f32 %v1389, %v1549
    %1551 = vmatprep.mubr.bf16.mxu0 0
    %1552 = vmatmul.mubr.bf16.gmra.mrb[0].mxu0 %v956
    %v1553 = vpop.f32.mrb[0].mxu0
    %v1554 = vadd.f32 %v1393, %v1553
    %v1555 = vpop.f32.mrb[0].mxu0
    %v1556 = vadd.f32 %v1395, %v1555
    %v1557 = vpop.f32.mrb[0].mxu0
    %v1558 = vadd.f32 %v1397, %v1557
    %v1559 = vpop.f32.mrb[0].mxu0
    %v1560 = vadd.f32 %v1399, %v1559
    %1561 = vmatprep.mubr.bf16.mxu0 0
    %1562 = vmatmul.mubr.bf16.gmra.mrb[0].mxu0 %v959
    %v1563 = vpop.f32.mrb[0].mxu0
    %v1564 = vadd.f32 %v1403, %v1563
    %v1565 = vpop.f32.mrb[0].mxu0
    %v1566 = vadd.f32 %v1405, %v1565
    %v1567 = vpop.f32.mrb[0].mxu0
    %v1568 = vadd.f32 %v1407, %v1567
    %v1569 = vpop.f32.mrb[0].mxu0
    %v1570 = vadd.f32 %v1409, %v1569
    %1571 = vmatprep.mubr.bf16.mxu0 0
    %1572 = vmatmul.mubr.bf16.gmra.mrb[0].mxu0 %v962
    %v1573 = vpop.f32.mrb[0].mxu0
    %v1574 = vadd.f32 %v1413, %v1573
    %v1575 = vpop.f32.mrb[0].mxu0
    %v1576 = vadd.f32 %v1415, %v1575
    %v1577 = vpop.f32.mrb[0].mxu0
    %v1578 = vadd.f32 %v1417, %v1577
    %v1579 = vpop.f32.mrb[0].mxu0
    %v1580 = vadd.f32 %v1419, %v1579
    %1581 = vmatprep.mubr.bf16.mxu0 0
    %1582 = vmatmul.mubr.bf16.gmra.mrb[0].mxu0 %v965
    %v1583 = vpop.f32.mrb[0].mxu0
    %v1584 = vadd.f32 %v1423, %v1583
    %v1585 = vpop.f32.mrb[0].mxu0
    %v1586 = vadd.f32 %v1425, %v1585
    %v1587 = vpop.f32.mrb[0].mxu0
    %v1588 = vadd.f32 %v1427, %v1587
    %v1589 = vpop.f32.mrb[0].mxu0
    %v1590 = vadd.f32 %v1429, %v1589
    %1591 = vmatprep.mubr.bf16.mxu0 0
    %1592 = vmatmul.mubr.bf16.gmra.mrb[0].mxu0 %v968
    %v1593 = vpop.f32.mrb[0].mxu0
    %v1594 = vadd.f32 %v1433, %v1593
    %v1595 = vpop.f32.mrb[0].mxu0
    %v1596 = vadd.f32 %v1435, %v1595
    %v1597 = vpop.f32.mrb[0].mxu0
    %v1598 = vadd.f32 %v1437, %v1597
    %v1599 = vpop.f32.mrb[0].mxu0
    %v1600 = vadd.f32 %v1439, %v1599
    %1601 = vmatprep.mubr.bf16.mxu0 0
    %1602 = vmatmul.mubr.bf16.gmra.mrb[0].mxu0 %v971
    %v1603 = vpop.f32.mrb[0].mxu0
    %v1604 = vadd.f32 %v1443, %v1603
    %v1605 = vpop.f32.mrb[0].mxu0
    %v1606 = vadd.f32 %v1445, %v1605
    %v1607 = vpop.f32.mrb[0].mxu0
    %v1608 = vadd.f32 %v1447, %v1607
    %v1609 = vpop.f32.mrb[0].mxu0
    %v1610 = vadd.f32 %v1449, %v1609
    %1611 = vmatprep.mubr.bf16.mxu0 0
    %1612 = vmatmul.mubr.bf16.gmra.mrb[0].mxu0 %v974
    %v1613 = vpop.f32.mrb[0].mxu0
    %v1614 = vadd.f32 %v1453, %v1613
    %v1615 = vpop.f32.mrb[0].mxu0
    %v1616 = vadd.f32 %v1455, %v1615
    %v1617 = vpop.f32.mrb[0].mxu0
    %v1618 = vpop.f32.mrb[0].mxu0
    %1619 = vdwg.mxu0
    %vm1620 = vcmp.gt.f32.partialorder %v1494, 0.0
    %vm1621 = vcmp.gt.f32.partialorder %v1496, 0.0
    %vm1622 = vcmp.gt.f32.partialorder %v1498, 0.0
    %vm1623 = vcmp.gt.f32.partialorder %v1500, 0.0
    %vm1624 = vcmp.gt.f32.partialorder %v1504, 0.0
    %vm1625 = vcmp.gt.f32.partialorder %v1506, 0.0
    %vm1626 = vcmp.gt.f32.partialorder %v1508, 0.0
    %vm1627 = vcmp.gt.f32.partialorder %v1510, 0.0
    %vm1628 = vcmp.gt.f32.partialorder %v1514, 0.0
    %vm1629 = vcmp.gt.f32.partialorder %v1516, 0.0
    %vm1630 = vcmp.gt.f32.partialorder %v1518, 0.0
    %vm1631 = vcmp.gt.f32.partialorder %v1520, 0.0
    %vm1632 = vcmp.gt.f32.partialorder %v1524, 0.0
    %vm1633 = vcmp.gt.f32.partialorder %v1526, 0.0
    %vm1634 = vcmp.gt.f32.partialorder %v1528, 0.0
    %vm1635 = vcmp.gt.f32.partialorder %v1530, 0.0
    %vm1636 = vcmp.gt.f32.partialorder %v1534, 0.0
    %vm1637 = vcmp.gt.f32.partialorder %v1536, 0.0
    %vm1638 = vcmp.gt.f32.partialorder %v1538, 0.0
    %vm1639 = vcmp.gt.f32.partialorder %v1540, 0.0
    %vm1640 = vcmp.gt.f32.partialorder %v1544, 0.0
    %vm1641 = vcmp.gt.f32.partialorder %v1546, 0.0
    %vm1642 = vcmp.gt.f32.partialorder %v1548, 0.0
    %vm1643 = vcmp.gt.f32.partialorder %v1550, 0.0
    %vm1644 = vcmp.gt.f32.partialorder %v1554, 0.0
    %vm1645 = vcmp.gt.f32.partialorder %v1556, 0.0
    %vm1646 = vcmp.gt.f32.partialorder %v1558, 0.0
    %vm1647 = vcmp.gt.f32.partialorder %v1560, 0.0
    %vm1648 = vcmp.gt.f32.partialorder %v1564, 0.0
    %vm1649 = vcmp.gt.f32.partialorder %v1566, 0.0
    %vm1650 = vcmp.gt.f32.partialorder %v1568, 0.0
    %vm1651 = vcmp.gt.f32.partialorder %v1570, 0.0
    %vm1652 = vcmp.gt.f32.partialorder %v1574, 0.0
    %vm1653 = vcmp.gt.f32.partialorder %v1576, 0.0
    %vm1654 = vcmp.gt.f32.partialorder %v1578, 0.0
    %vm1655 = vcmp.gt.f32.partialorder %v1580, 0.0
    %vm1656 = vcmp.gt.f32.partialorder %v1584, 0.0
    %vm1657 = vcmp.gt.f32.partialorder %v1586, 0.0
    %vm1658 = vcmp.gt.f32.partialorder %v1588, 0.0
    %vm1659 = vcmp.gt.f32.partialorder %v1590, 0.0
    %vm1660 = vcmp.gt.f32.partialorder %v1594, 0.0
    %vm1661 = vcmp.gt.f32.partialorder %v1596, 0.0
    %vm1662 = vcmp.gt.f32.partialorder %v1598, 0.0
    %vm1663 = vcmp.gt.f32.partialorder %v1600, 0.0
    %vm1664 = vcmp.gt.f32.partialorder %v1604, 0.0
    %vm1665 = vcmp.gt.f32.partialorder %v1606, 0.0
    %vm1666 = vcmp.gt.f32.partialorder %v1608, 0.0
    %vm1667 = vcmp.gt.f32.partialorder %v1610, 0.0
    %vm1668 = vcmp.gt.f32.partialorder %v1614, 0.0
    %vm1669 = vcmp.gt.f32.partialorder %v1616, 0.0
    %v1670 = vmul.f32 %v1494, 0.2
    %v1671 = vmul.f32 %v1496, 0.2
    %v1672 = vmul.f32 %v1498, 0.2
    %v1673 = vmul.f32 %v1500, 0.2
    %v1674 = vmul.f32 %v1504, 0.2
    %v1675 = vmul.f32 %v1506, 0.2
    %v1676 = vmul.f32 %v1508, 0.2
    %v1677 = vmul.f32 %v1510, 0.2
    %v1678 = vmul.f32 %v1514, 0.2
    %v1679 = vmul.f32 %v1516, 0.2
    %v1680 = vmul.f32 %v1518, 0.2
    %v1681 = vmul.f32 %v1520, 0.2
    %v1682 = vmul.f32 %v1524, 0.2
    %v1683 = vmul.f32 %v1526, 0.2
    %v1684 = vmul.f32 %v1528, 0.2
    %v1685 = vmul.f32 %v1530, 0.2
    %v1686 = vmul.f32 %v1534, 0.2
    %v1687 = vmul.f32 %v1536, 0.2
    %v1688 = vmul.f32 %v1538, 0.2
    %v1689 = vmul.f32 %v1540, 0.2
    %v1690 = vmul.f32 %v1544, 0.2
    %v1691 = vmul.f32 %v1546, 0.2
    %v1692 = vmul.f32 %v1548, 0.2
    %v1693 = vmul.f32 %v1550, 0.2
    %v1694 = vmul.f32 %v1554, 0.2
    %v1695 = vmul.f32 %v1556, 0.2
    %v1696 = vmul.f32 %v1558, 0.2
    %v1697 = vmul.f32 %v1560, 0.2
    %v1698 = vmul.f32 %v1564, 0.2
    %v1699 = vmul.f32 %v1566, 0.2
    %v1700 = vmul.f32 %v1568, 0.2
    %v1701 = vmul.f32 %v1570, 0.2
    %v1702 = vmul.f32 %v1574, 0.2
    %v1703 = vmul.f32 %v1576, 0.2
    %v1704 = vmul.f32 %v1578, 0.2
    %v1705 = vmul.f32 %v1580, 0.2
    %v1706 = vmul.f32 %v1584, 0.2
    %v1707 = vmul.f32 %v1586, 0.2
    %v1708 = vmul.f32 %v1588, 0.2
    %v1709 = vmul.f32 %v1590, 0.2
    %v1710 = vmul.f32 %v1594, 0.2
    %v1711 = vmul.f32 %v1596, 0.2
    %v1712 = vmul.f32 %v1598, 0.2
    %v1713 = vmul.f32 %v1600, 0.2
    %v1714 = vmul.f32 %v1604, 0.2
    %v1715 = vmul.f32 %v1606, 0.2
    %v1716 = vmul.f32 %v1608, 0.2
    %v1717 = vmul.f32 %v1610, 0.2
    %v1718 = vmul.f32 %v1614, 0.2
    %v1719 = vmul.f32 %v1616, 0.2
    %v1720 = vsel %vm1620, %v1494, %v1670
    %v1721 = vsel %vm1621, %v1496, %v1671
    %v1722 = vsel %vm1622, %v1498, %v1672
    %v1723 = vsel %vm1623, %v1500, %v1673
    %v1724 = vsel %vm1624, %v1504, %v1674
    %v1725 = vsel %vm1625, %v1506, %v1675
    %v1726 = vsel %vm1626, %v1508, %v1676
    %v1727 = vsel %vm1627, %v1510, %v1677
    %v1728 = vsel %vm1628, %v1514, %v1678
    %v1729 = vsel %vm1629, %v1516, %v1679
    %v1730 = vsel %vm1630, %v1518, %v1680
    %v1731 = vsel %vm1631, %v1520, %v1681
    %v1732 = vsel %vm1632, %v1524, %v1682
    %v1733 = vsel %vm1633, %v1526, %v1683
    %v1734 = vsel %vm1634, %v1528, %v1684
    %v1735 = vsel %vm1635, %v1530, %v1685
    %v1736 = vsel %vm1636, %v1534, %v1686
    %v1737 = vsel %vm1637, %v1536, %v1687
    %v1738 = vsel %vm1638, %v1538, %v1688
    %v1739 = vsel %vm1639, %v1540, %v1689
    %v1740 = vsel %vm1640, %v1544, %v1690
    %v1741 = vsel %vm1641, %v1546, %v1691
    %v1742 = vsel %vm1642, %v1548, %v1692
    %v1743 = vsel %vm1643, %v1550, %v1693
    %v1744 = vsel %vm1644, %v1554, %v1694
    %v1745 = vsel %vm1645, %v1556, %v1695
    %v1746 = vsel %vm1646, %v1558, %v1696
    %v1747 = vsel %vm1647, %v1560, %v1697
    %v1748 = vsel %vm1648, %v1564, %v1698
    %v1749 = vsel %vm1649, %v1566, %v1699
    %v1750 = vsel %vm1650, %v1568, %v1700
    %v1751 = vsel %vm1651, %v1570, %v1701
    %v1752 = vsel %vm1652, %v1574, %v1702
    %v1753 = vsel %vm1653, %v1576, %v1703
    %v1754 = vsel %vm1654, %v1578, %v1704
    %v1755 = vsel %vm1655, %v1580, %v1705
    %v1756 = vsel %vm1656, %v1584, %v1706
    %v1757 = vsel %vm1657, %v1586, %v1707
    %v1758 = vsel %vm1658, %v1588, %v1708
    %v1759 = vsel %vm1659, %v1590, %v1709
    %v1760 = vsel %vm1660, %v1594, %v1710
    %v1761 = vsel %vm1661, %v1596, %v1711
    %v1762 = vsel %vm1662, %v1598, %v1712
    %v1763 = vsel %vm1663, %v1600, %v1713
    %v1764 = vsel %vm1664, %v1604, %v1714
    %v1765 = vsel %vm1665, %v1606, %v1715
    %v1766 = vsel %vm1666, %v1608, %v1716
    %v1767 = vsel %vm1667, %v1610, %v1717
    %v1768 = vsel %vm1668, %v1614, %v1718
    %v1769 = vsel %vm1669, %v1616, %v1719
    %v1770 = vpack.c.bf16 %v1722, %v1720
    %v1771 = vpack.c.bf16 %v1723, %v1721
    %v1772 = vpack.c.bf16 %v1726, %v1724
    %v1773 = vpack.c.bf16 %v1727, %v1725
    %v1774 = vpack.c.bf16 %v1730, %v1728
    %v1775 = vpack.c.bf16 %v1731, %v1729
    %v1776 = vpack.c.bf16 %v1734, %v1732
    %v1777 = vpack.c.bf16 %v1735, %v1733
    %v1778 = vpack.c.bf16 %v1738, %v1736
    %v1779 = vpack.c.bf16 %v1739, %v1737
    %v1780 = vpack.c.bf16 %v1742, %v1740
    %v1781 = vpack.c.bf16 %v1743, %v1741
    %v1782 = vpack.c.bf16 %v1746, %v1744
    %v1783 = vpack.c.bf16 %v1747, %v1745
    %v1784 = vpack.c.bf16 %v1750, %v1748
    %v1785 = vpack.c.bf16 %v1751, %v1749
    %v1786 = vpack.c.bf16 %v1754, %v1752
    %v1787 = vpack.c.bf16 %v1755, %v1753
    %v1788 = vpack.c.bf16 %v1758, %v1756
    %v1789 = vpack.c.bf16 %v1759, %v1757
    %v1790 = vpack.c.bf16 %v1762, %v1760
    %v1791 = vpack.c.bf16 %v1763, %v1761
    %v1792 = vpack.c.bf16 %v1766, %v1764
    %v1793 = vpack.c.bf16 %v1767, %v1765
    %v1794 = vpack.c.bf16 %v1768, %v1768
    %v1795 = vpack.c.bf16 %v1769, %v1769
    %v1796 = vld [vmem:[#allocation7] sm:$0xff]
    %v1797 = vld [vmem:[#allocation7 + $0x8] sm:$0xff]
    %v1798 = vld [vmem:[#allocation7 + $0x10] sm:$0xff]
    %v1799 = vld [vmem:[#allocation7 + $0x18] sm:$0xff]
    %v1800 = vld [vmem:[#allocation7 + $0x20] sm:$0xff]
    %v1801 = vld [vmem:[#allocation7 + $0x28] sm:$0xff]
    %v1802 = vld [vmem:[#allocation7 + $0x30] sm:$0xff]
    %v1803 = vld [vmem:[#allocation7 + $0x38] sm:$0xff]
    %v1804 = vld [vmem:[#allocation7 + $0x40] sm:$0xff]
    %v1805 = vld [vmem:[#allocation7 + $0x48] sm:$0xff]
    %v1806 = vld [vmem:[#allocation7 + $0x50] sm:$0xff]
    %v1807 = vld [vmem:[#allocation7 + $0x58] sm:$0xff]
    %v1808 = vld [vmem:[#allocation7 + $0x60] sm:$0xff]
    %v1809 = vld [vmem:[#allocation7 + $0x68] sm:$0xff]
    %v1810 = vld [vmem:[#allocation7 + $0x70] sm:$0xff]
    %v1811 = vld [vmem:[#allocation7 + $0x78] sm:$0xff]
    %v1812 = vld [vmem:[#allocation7 + $0x80] sm:$0xff]
    %v1813 = vld [vmem:[#allocation7 + $0x88] sm:$0xff]
    %v1814 = vld [vmem:[#allocation7 + $0x90] sm:$0xff]
    %v1815 = vld [vmem:[#allocation7 + $0x98] sm:$0xff]
    %v1816 = vld [vmem:[#allocation7 + $0xa0] sm:$0xff]
    %v1817 = vld [vmem:[#allocation7 + $0xa8] sm:$0xff]
    %v1818 = vld [vmem:[#allocation7 + $0xb0] sm:$0xff]
    %v1819 = vld [vmem:[#allocation7 + $0xb8] sm:$0xff]
    %v1820 = vld [vmem:[#allocation7 + $0xc0] sm:$0xff]
    %v1821 = vld [vmem:[#allocation7 + $0xc8] sm:$0xff]
    %v1822 = vld [vmem:[#allocation7 + $0xd0] sm:$0xff]
    %v1823 = vld [vmem:[#allocation7 + $0xd8] sm:$0xff]
    %v1824 = vld [vmem:[#allocation7 + $0xe0] sm:$0xff]
    %v1825 = vld [vmem:[#allocation7 + $0xe8] sm:$0xff]
    %v1826 = vld [vmem:[#allocation7 + $0xf0] sm:$0xff]
    %v1827 = vld [vmem:[#allocation7 + $0xf8] sm:$0xff]
    %v1828 = vld [vmem:[%s4] sm:$0x3]
    %v1830 = vlaneseq
    %v1831 = vshrl.u32 %v1830, 7
    %v1832 = vsub.s32 0, %v1831
    %v1833 = vrot.slane %v1828, %v1832
    %v1834 = vlaneseq
    %v1835 = vshrl.u32 %v1834, 7
    %v1836 = vsub.s32 1, %v1835
    %v1837 = vrot.slane %v1828, %v1836
    %v1872 = vunpack.c.l.b16 %v1796
    %v1873 = vunpack.c.h.b16 %v1796
    %v1874 = vunpack.c.l.b16 %v1797
    %v1875 = vunpack.c.h.b16 %v1797
    %v1876 = vunpack.c.l.b16 %v1798
    %v1877 = vunpack.c.h.b16 %v1798
    %v1878 = vunpack.c.l.b16 %v1799
    %v1879 = vunpack.c.h.b16 %v1799
    %v1880 = vunpack.c.l.b16 %v1800
    %v1881 = vunpack.c.h.b16 %v1800
    %v1882 = vunpack.c.l.b16 %v1801
    %v1883 = vunpack.c.h.b16 %v1801
    %v1884 = vunpack.c.l.b16 %v1802
    %v1885 = vunpack.c.h.b16 %v1802
    %v1886 = vunpack.c.l.b16 %v1803
    %v1887 = vunpack.c.h.b16 %v1803
    %v1888 = vunpack.c.l.b16 %v1804
    %v1889 = vunpack.c.h.b16 %v1804
    %v1890 = vunpack.c.l.b16 %v1805
    %v1891 = vunpack.c.h.b16 %v1805
    %v1892 = vunpack.c.l.b16 %v1806
    %v1893 = vunpack.c.h.b16 %v1806
    %v1894 = vunpack.c.l.b16 %v1807
    %v1895 = vunpack.c.h.b16 %v1807
    %v1896 = vunpack.c.l.b16 %v1808
    %v1897 = vunpack.c.h.b16 %v1808
    %v1898 = vunpack.c.l.b16 %v1809
    %v1899 = vunpack.c.h.b16 %v1809
    %v1900 = vunpack.c.l.b16 %v1810
    %v1901 = vunpack.c.h.b16 %v1810
    %v1902 = vunpack.c.l.b16 %v1811
    %v1903 = vunpack.c.h.b16 %v1811
    %v1904 = vunpack.c.l.b16 %v1812
    %v1905 = vunpack.c.h.b16 %v1812
    %v1906 = vunpack.c.l.b16 %v1813
    %v1907 = vunpack.c.h.b16 %v1813
    %v1908 = vunpack.c.l.b16 %v1814
    %v1909 = vunpack.c.h.b16 %v1814
    %v1910 = vunpack.c.l.b16 %v1815
    %v1911 = vunpack.c.h.b16 %v1815
    %v1912 = vunpack.c.l.b16 %v1816
    %v1913 = vunpack.c.h.b16 %v1816
    %v1914 = vunpack.c.l.b16 %v1817
    %v1915 = vunpack.c.h.b16 %v1817
    %v1916 = vunpack.c.l.b16 %v1818
    %v1917 = vunpack.c.h.b16 %v1818
    %v1918 = vunpack.c.l.b16 %v1819
    %v1919 = vunpack.c.h.b16 %v1819
    %v1920 = vunpack.c.l.b16 %v1820
    %v1921 = vunpack.c.h.b16 %v1820
    %v1922 = vunpack.c.l.b16 %v1821
    %v1923 = vunpack.c.h.b16 %v1821
    %v1924 = vunpack.c.l.b16 %v1822
    %v1925 = vunpack.c.h.b16 %v1822
    %v1926 = vunpack.c.l.b16 %v1823
    %v1927 = vunpack.c.h.b16 %v1823
    %v1928 = vunpack.c.l.b16 %v1824
    %v1929 = vunpack.c.h.b16 %v1824
    %v1930 = vunpack.c.l.b16 %v1825
    %v1931 = vunpack.c.h.b16 %v1825
    %v1932 = vunpack.c.l.b16 %v1826
    %v1933 = vunpack.c.h.b16 %v1826
    %v1934 = vunpack.c.l.b16 %v1827
    %v1935 = vunpack.c.h.b16 %v1827
    %v1936 = vpack.c.b16 %v1874, %v1872
    %v1937 = vpack.c.b16 %v1875, %v1873
    %v1938 = vpack.c.b16 %v1878, %v1876
    %v1939 = vpack.c.b16 %v1879, %v1877
    %v1940 = vpack.c.b16 %v1882, %v1880
    %v1941 = vpack.c.b16 %v1883, %v1881
    %v1942 = vpack.c.b16 %v1886, %v1884
    %v1943 = vpack.c.b16 %v1887, %v1885
    %v1944 = vpack.c.b16 %v1890, %v1888
    %v1945 = vpack.c.b16 %v1891, %v1889
    %v1946 = vpack.c.b16 %v1894, %v1892
    %v1947 = vpack.c.b16 %v1895, %v1893
    %v1948 = vpack.c.b16 %v1898, %v1896
    %v1949 = vpack.c.b16 %v1899, %v1897
    %v1950 = vpack.c.b16 %v1902, %v1900
    %v1951 = vpack.c.b16 %v1903, %v1901
    %v1952 = vpack.c.b16 %v1906, %v1904
    %v1953 = vpack.c.b16 %v1907, %v1905
    %v1954 = vpack.c.b16 %v1910, %v1908
    %v1955 = vpack.c.b16 %v1911, %v1909
    %v1956 = vpack.c.b16 %v1914, %v1912
    %v1957 = vpack.c.b16 %v1915, %v1913
    %v1958 = vpack.c.b16 %v1918, %v1916
    %v1959 = vpack.c.b16 %v1919, %v1917
    %v1960 = vpack.c.b16 %v1922, %v1920
    %v1961 = vpack.c.b16 %v1923, %v1921
    %v1962 = vpack.c.b16 %v1926, %v1924
    %v1963 = vpack.c.b16 %v1927, %v1925
    %v1964 = vpack.c.b16 %v1930, %v1928
    %v1965 = vpack.c.b16 %v1931, %v1929
    %v1966 = vpack.c.b16 %v1934, %v1932
    %v1967 = vpack.c.b16 %v1935, %v1933
    %2000 = vmatprep.subr.bf16.mxu0 %v1937
    %2001 = vmatpush1.bf16.msra.mxu0 %v1936
    %2002 = vmatprep.subr.bf16.mxu0 %v1939
    %2003 = vmatpush1.bf16.msra.mxu0 %v1938
    %2004 = vmatprep.subr.bf16.mxu0 %v1941
    %2005 = vmatpush1.bf16.msra.mxu0 %v1940
    %2006 = vmatprep.subr.bf16.mxu0 %v1943
    %2007 = vmatpush1.bf16.msra.mxu0 %v1942
    %2008 = vmatprep.subr.bf16.mxu0 %v1945
    %2009 = vmatpush1.bf16.msra.mxu0 %v1944
    %2010 = vmatprep.subr.bf16.mxu0 %v1947
    %2011 = vmatpush1.bf16.msra.mxu0 %v1946
    %2012 = vmatprep.subr.bf16.mxu0 %v1949
    %2013 = vmatpush1.bf16.msra.mxu0 %v1948
    %2014 = vmatprep.subr.bf16.mxu0 %v1951
    %2015 = vmatpush1.bf16.msra.mxu0 %v1950
    %2016 = vmatprep.subr.bf16.mxu0 %v1953
    %2017 = vmatpush1.bf16.msra.mxu0 %v1952
    %2018 = vmatprep.subr.bf16.mxu0 %v1955
    %2019 = vmatpush1.bf16.msra.mxu0 %v1954
    %2020 = vmatprep.subr.bf16.mxu0 %v1957
    %2021 = vmatpush1.bf16.msra.mxu0 %v1956
    %2022 = vmatprep.subr.bf16.mxu0 %v1959
    %2023 = vmatpush1.bf16.msra.mxu0 %v1958
    %2024 = vmatprep.subr.bf16.mxu0 %v1961
    %2025 = vmatpush1.bf16.msra.mxu0 %v1960
    %2026 = vmatprep.subr.bf16.mxu0 %v1963
    %2027 = vmatpush1.bf16.msra.mxu0 %v1962
    %2028 = vmatprep.subr.bf16.mxu0 %v1965
    %2029 = vmatpush1.bf16.msra.mxu0 %v1964
    %2030 = vmatprep.subr.bf16.mxu0 %v1967
    %2031 = vmatpush1.bf16.msra.mxu0 %v1966
    %2032 = vmatprep.mubr.bf16.mxu0 %v1771
    %2033 = vmatmul.mubr.bf16.gmra.mrb[0].mxu0 %v1770
    %v2034 = vpop.f32.mrb[0].mxu0
    %v2035 = vadd.f32 %v1833, %v2034
    %v2036 = vpop.f32.mrb[0].mxu0
    %v2037 = vadd.f32 %v1837, %v2036
    %v2038 = vpop.f32.mrb[0].mxu0
    %v2039 = vadd.f32 %v1833, %v2038
    %v2040 = vpop.f32.mrb[0].mxu0
    %v2041 = vadd.f32 %v1837, %v2040
    %2042 = vmatprep.mubr.bf16.mxu0 %v1773
    %2043 = vmatmul.mubr.bf16.gmra.mrb[0].mxu0 %v1772
    %v2044 = vpop.f32.mrb[0].mxu0
    %v2045 = vadd.f32 %v1833, %v2044
    %v2046 = vpop.f32.mrb[0].mxu0
    %v2047 = vadd.f32 %v1837, %v2046
    %v2048 = vpop.f32.mrb[0].mxu0
    %v2049 = vadd.f32 %v1833, %v2048
    %v2050 = vpop.f32.mrb[0].mxu0
    %v2051 = vadd.f32 %v1837, %v2050
    %2052 = vmatprep.mubr.bf16.mxu0 %v1775
    %2053 = vmatmul.mubr.bf16.gmra.mrb[0].mxu0 %v1774
    %v2054 = vpop.f32.mrb[0].mxu0
    %v2055 = vadd.f32 %v1833, %v2054
    %v2056 = vpop.f32.mrb[0].mxu0
    %v2057 = vadd.f32 %v1837, %v2056
    %v2058 = vpop.f32.mrb[0].mxu0
    %v2059 = vadd.f32 %v1833, %v2058
    %v2060 = vpop.f32.mrb[0].mxu0
    %v2061 = vadd.f32 %v1837, %v2060
    %2062 = vmatprep.mubr.bf16.mxu0 %v1777
    %2063 = vmatmul.mubr.bf16.gmra.mrb[0].mxu0 %v1776
    %v2064 = vpop.f32.mrb[0].mxu0
    %v2065 = vadd.f32 %v1833, %v2064
    %v2066 = vpop.f32.mrb[0].mxu0
    %v2067 = vadd.f32 %v1837, %v2066
    %v2068 = vpop.f32.mrb[0].mxu0
    %v2069 = vadd.f32 %v1833, %v2068
    %v2070 = vpop.f32.mrb[0].mxu0
    %v2071 = vadd.f32 %v1837, %v2070
    %2072 = vmatprep.mubr.bf16.mxu0 %v1779
    %2073 = vmatmul.mubr.bf16.gmra.mrb[0].mxu0 %v1778
    %v2074 = vpop.f32.mrb[0].mxu0
    %v2075 = vadd.f32 %v1833, %v2074
    %v2076 = vpop.f32.mrb[0].mxu0
    %v2077 = vadd.f32 %v1837, %v2076
    %v2078 = vpop.f32.mrb[0].mxu0
    %v2079 = vadd.f32 %v1833, %v2078
    %v2080 = vpop.f32.mrb[0].mxu0
    %v2081 = vadd.f32 %v1837, %v2080
    %2082 = vmatprep.mubr.bf16.mxu0 %v1781
    %2083 = vmatmul.mubr.bf16.gmra.mrb[0].mxu0 %v1780
    %v2084 = vpop.f32.mrb[0].mxu0
    %v2085 = vadd.f32 %v1833, %v2084
    %v2086 = vpop.f32.mrb[0].mxu0
    %v2087 = vadd.f32 %v1837, %v2086
    %v2088 = vpop.f32.mrb[0].mxu0
    %v2089 = vadd.f32 %v1833, %v2088
    %v2090 = vpop.f32.mrb[0].mxu0
    %v2091 = vadd.f32 %v1837, %v2090
    %2092 = vmatprep.mubr.bf16.mxu0 %v1783
    %2093 = vmatmul.mubr.bf16.gmra.mrb[0].mxu0 %v1782
    %v2094 = vpop.f32.mrb[0].mxu0
    %v2095 = vadd.f32 %v1833, %v2094
    %v2096 = vpop.f32.mrb[0].mxu0
    %v2097 = vadd.f32 %v1837, %v2096
    %v2098 = vpop.f32.mrb[0].mxu0
    %v2099 = vadd.f32 %v1833, %v2098
    %v2100 = vpop.f32.mrb[0].mxu0
    %v2101 = vadd.f32 %v1837, %v2100
    %2102 = vmatprep.mubr.bf16.mxu0 %v1785
    %2103 = vmatmul.mubr.bf16.gmra.mrb[0].mxu0 %v1784
    %v2104 = vpop.f32.mrb[0].mxu0
    %v2105 = vadd.f32 %v1833, %v2104
    %v2106 = vpop.f32.mrb[0].mxu0
    %v2107 = vadd.f32 %v1837, %v2106
    %v2108 = vpop.f32.mrb[0].mxu0
    %v2109 = vadd.f32 %v1833, %v2108
    %v2110 = vpop.f32.mrb[0].mxu0
    %v2111 = vadd.f32 %v1837, %v2110
    %2112 = vmatprep.mubr.bf16.mxu0 %v1787
    %2113 = vmatmul.mubr.bf16.gmra.mrb[0].mxu0 %v1786
    %v2114 = vpop.f32.mrb[0].mxu0
    %v2115 = vadd.f32 %v1833, %v2114
    %v2116 = vpop.f32.mrb[0].mxu0
    %v2117 = vadd.f32 %v1837, %v2116
    %v2118 = vpop.f32.mrb[0].mxu0
    %v2119 = vadd.f32 %v1833, %v2118
    %v2120 = vpop.f32.mrb[0].mxu0
    %v2121 = vadd.f32 %v1837, %v2120
    %2122 = vmatprep.mubr.bf16.mxu0 %v1789
    %2123 = vmatmul.mubr.bf16.gmra.mrb[0].mxu0 %v1788
    %v2124 = vpop.f32.mrb[0].mxu0
    %v2125 = vadd.f32 %v1833, %v2124
    %v2126 = vpop.f32.mrb[0].mxu0
    %v2127 = vadd.f32 %v1837, %v2126
    %v2128 = vpop.f32.mrb[0].mxu0
    %v2129 = vadd.f32 %v1833, %v2128
    %v2130 = vpop.f32.mrb[0].mxu0
    %v2131 = vadd.f32 %v1837, %v2130
    %2132 = vmatprep.mubr.bf16.mxu0 %v1791
    %2133 = vmatmul.mubr.bf16.gmra.mrb[0].mxu0 %v1790
    %v2134 = vpop.f32.mrb[0].mxu0
    %v2135 = vadd.f32 %v1833, %v2134
    %v2136 = vpop.f32.mrb[0].mxu0
    %v2137 = vadd.f32 %v1837, %v2136
    %v2138 = vpop.f32.mrb[0].mxu0
    %v2139 = vadd.f32 %v1833, %v2138
    %v2140 = vpop.f32.mrb[0].mxu0
    %v2141 = vadd.f32 %v1837, %v2140
    %2142 = vmatprep.mubr.bf16.mxu0 %v1793
    %2143 = vmatmul.mubr.bf16.gmra.mrb[0].mxu0 %v1792
    %v2144 = vpop.f32.mrb[0].mxu0
    %v2145 = vadd.f32 %v1833, %v2144
    %v2146 = vpop.f32.mrb[0].mxu0
    %v2147 = vadd.f32 %v1837, %v2146
    %v2148 = vpop.f32.mrb[0].mxu0
    %v2149 = vadd.f32 %v1833, %v2148
    %v2150 = vpop.f32.mrb[0].mxu0
    %v2151 = vadd.f32 %v1837, %v2150
    %2152 = vmatprep.mubr.bf16.mxu0 %v1795
    %2153 = vmatmul.mubr.bf16.gmra.mrb[0].mxu0 %v1794
    %v2154 = vpop.f32.mrb[0].mxu0
    %v2155 = vadd.f32 %v1833, %v2154
    %v2156 = vpop.f32.mrb[0].mxu0
    %v2157 = vadd.f32 %v1837, %v2156
    %v2158 = vpop.f32.mrb[0].mxu0
    %v2159 = vpop.f32.mrb[0].mxu0
    %2160 = vdwg.mxu0
    %vm2161 = vcmp.gt.f32.partialorder %v2035, 0.0
    %vm2162 = vcmp.gt.f32.partialorder %v2037, 0.0
    %vm2163 = vcmp.gt.f32.partialorder %v2039, 0.0
    %vm2164 = vcmp.gt.f32.partialorder %v2041, 0.0
    %vm2165 = vcmp.gt.f32.partialorder %v2045, 0.0
    %vm2166 = vcmp.gt.f32.partialorder %v2047, 0.0
    %vm2167 = vcmp.gt.f32.partialorder %v2049, 0.0
    %vm2168 = vcmp.gt.f32.partialorder %v2051, 0.0
    %vm2169 = vcmp.gt.f32.partialorder %v2055, 0.0
    %vm2170 = vcmp.gt.f32.partialorder %v2057, 0.0
    %vm2171 = vcmp.gt.f32.partialorder %v2059, 0.0
    %vm2172 = vcmp.gt.f32.partialorder %v2061, 0.0
    %vm2173 = vcmp.gt.f32.partialorder %v2065, 0.0
    %vm2174 = vcmp.gt.f32.partialorder %v2067, 0.0
    %vm2175 = vcmp.gt.f32.partialorder %v2069, 0.0
    %vm2176 = vcmp.gt.f32.partialorder %v2071, 0.0
    %vm2177 = vcmp.gt.f32.partialorder %v2075, 0.0
    %vm2178 = vcmp.gt.f32.partialorder %v2077, 0.0
    %vm2179 = vcmp.gt.f32.partialorder %v2079, 0.0
    %vm2180 = vcmp.gt.f32.partialorder %v2081, 0.0
    %vm2181 = vcmp.gt.f32.partialorder %v2085, 0.0
    %vm2182 = vcmp.gt.f32.partialorder %v2087, 0.0
    %vm2183 = vcmp.gt.f32.partialorder %v2089, 0.0
    %vm2184 = vcmp.gt.f32.partialorder %v2091, 0.0
    %vm2185 = vcmp.gt.f32.partialorder %v2095, 0.0
    %vm2186 = vcmp.gt.f32.partialorder %v2097, 0.0
    %vm2187 = vcmp.gt.f32.partialorder %v2099, 0.0
    %vm2188 = vcmp.gt.f32.partialorder %v2101, 0.0
    %vm2189 = vcmp.gt.f32.partialorder %v2105, 0.0
    %vm2190 = vcmp.gt.f32.partialorder %v2107, 0.0
    %vm2191 = vcmp.gt.f32.partialorder %v2109, 0.0
    %vm2192 = vcmp.gt.f32.partialorder %v2111, 0.0
    %vm2193 = vcmp.gt.f32.partialorder %v2115, 0.0
    %vm2194 = vcmp.gt.f32.partialorder %v2117, 0.0
    %vm2195 = vcmp.gt.f32.partialorder %v2119, 0.0
    %vm2196 = vcmp.gt.f32.partialorder %v2121, 0.0
    %vm2197 = vcmp.gt.f32.partialorder %v2125, 0.0
    %vm2198 = vcmp.gt.f32.partialorder %v2127, 0.0
    %vm2199 = vcmp.gt.f32.partialorder %v2129, 0.0
    %vm2200 = vcmp.gt.f32.partialorder %v2131, 0.0
    %vm2201 = vcmp.gt.f32.partialorder %v2135, 0.0
    %vm2202 = vcmp.gt.f32.partialorder %v2137, 0.0
    %vm2203 = vcmp.gt.f32.partialorder %v2139, 0.0
    %vm2204 = vcmp.gt.f32.partialorder %v2141, 0.0
    %vm2205 = vcmp.gt.f32.partialorder %v2145, 0.0
    %vm2206 = vcmp.gt.f32.partialorder %v2147, 0.0
    %vm2207 = vcmp.gt.f32.partialorder %v2149, 0.0
    %vm2208 = vcmp.gt.f32.partialorder %v2151, 0.0
    %vm2209 = vcmp.gt.f32.partialorder %v2155, 0.0
    %vm2210 = vcmp.gt.f32.partialorder %v2157, 0.0
    %v2211 = vmul.f32 %v2035, 0.2
    %v2212 = vmul.f32 %v2037, 0.2
    %v2213 = vmul.f32 %v2039, 0.2
    %v2214 = vmul.f32 %v2041, 0.2
    %v2215 = vmul.f32 %v2045, 0.2
    %v2216 = vmul.f32 %v2047, 0.2
    %v2217 = vmul.f32 %v2049, 0.2
    %v2218 = vmul.f32 %v2051, 0.2
    %v2219 = vmul.f32 %v2055, 0.2
    %v2220 = vmul.f32 %v2057, 0.2
    %v2221 = vmul.f32 %v2059, 0.2
    %v2222 = vmul.f32 %v2061, 0.2
    %v2223 = vmul.f32 %v2065, 0.2
    %v2224 = vmul.f32 %v2067, 0.2
    %v2225 = vmul.f32 %v2069, 0.2
    %v2226 = vmul.f32 %v2071, 0.2
    %v2227 = vmul.f32 %v2075, 0.2
    %v2228 = vmul.f32 %v2077, 0.2
    %v2229 = vmul.f32 %v2079, 0.2
    %v2230 = vmul.f32 %v2081, 0.2
    %v2231 = vmul.f32 %v2085, 0.2
    %v2232 = vmul.f32 %v2087, 0.2
    %v2233 = vmul.f32 %v2089, 0.2
    %v2234 = vmul.f32 %v2091, 0.2
    %v2235 = vmul.f32 %v2095, 0.2
    %v2236 = vmul.f32 %v2097, 0.2
    %v2237 = vmul.f32 %v2099, 0.2
    %v2238 = vmul.f32 %v2101, 0.2
    %v2239 = vmul.f32 %v2105, 0.2
    %v2240 = vmul.f32 %v2107, 0.2
    %v2241 = vmul.f32 %v2109, 0.2
    %v2242 = vmul.f32 %v2111, 0.2
    %v2243 = vmul.f32 %v2115, 0.2
    %v2244 = vmul.f32 %v2117, 0.2
    %v2245 = vmul.f32 %v2119, 0.2
    %v2246 = vmul.f32 %v2121, 0.2
    %v2247 = vmul.f32 %v2125, 0.2
    %v2248 = vmul.f32 %v2127, 0.2
    %v2249 = vmul.f32 %v2129, 0.2
    %v2250 = vmul.f32 %v2131, 0.2
    %v2251 = vmul.f32 %v2135, 0.2
    %v2252 = vmul.f32 %v2137, 0.2
    %v2253 = vmul.f32 %v2139, 0.2
    %v2254 = vmul.f32 %v2141, 0.2
    %v2255 = vmul.f32 %v2145, 0.2
    %v2256 = vmul.f32 %v2147, 0.2
    %v2257 = vmul.f32 %v2149, 0.2
    %v2258 = vmul.f32 %v2151, 0.2
    %v2259 = vmul.f32 %v2155, 0.2
    %v2260 = vmul.f32 %v2157, 0.2
    %v2261 = vsel %vm2161, %v2035, %v2211
    %v2262 = vsel %vm2162, %v2037, %v2212
    %v2263 = vsel %vm2163, %v2039, %v2213
    %v2264 = vsel %vm2164, %v2041, %v2214
    %v2265 = vsel %vm2165, %v2045, %v2215
    %v2266 = vsel %vm2166, %v2047, %v2216
    %v2267 = vsel %vm2167, %v2049, %v2217
    %v2268 = vsel %vm2168, %v2051, %v2218
    %v2269 = vsel %vm2169, %v2055, %v2219
    %v2270 = vsel %vm2170, %v2057, %v2220
    %v2271 = vsel %vm2171, %v2059, %v2221
    %v2272 = vsel %vm2172, %v2061, %v2222
    %v2273 = vsel %vm2173, %v2065, %v2223
    %v2274 = vsel %vm2174, %v2067, %v2224
    %v2275 = vsel %vm2175, %v2069, %v2225
    %v2276 = vsel %vm2176, %v2071, %v2226
    %v2277 = vsel %vm2177, %v2075, %v2227
    %v2278 = vsel %vm2178, %v2077, %v2228
    %v2279 = vsel %vm2179, %v2079, %v2229
    %v2280 = vsel %vm2180, %v2081, %v2230
    %v2281 = vsel %vm2181, %v2085, %v2231
    %v2282 = vsel %vm2182, %v2087, %v2232
    %v2283 = vsel %vm2183, %v2089, %v2233
    %v2284 = vsel %vm2184, %v2091, %v2234
    %v2285 = vsel %vm2185, %v2095, %v2235
    %v2286 = vsel %vm2186, %v2097, %v2236
    %v2287 = vsel %vm2187, %v2099, %v2237
    %v2288 = vsel %vm2188, %v2101, %v2238
    %v2289 = vsel %vm2189, %v2105, %v2239
    %v2290 = vsel %vm2190, %v2107, %v2240
    %v2291 = vsel %vm2191, %v2109, %v2241
    %v2292 = vsel %vm2192, %v2111, %v2242
    %v2293 = vsel %vm2193, %v2115, %v2243
    %v2294 = vsel %vm2194, %v2117, %v2244
    %v2295 = vsel %vm2195, %v2119, %v2245
    %v2296 = vsel %vm2196, %v2121, %v2246
    %v2297 = vsel %vm2197, %v2125, %v2247
    %v2298 = vsel %vm2198, %v2127, %v2248
    %v2299 = vsel %vm2199, %v2129, %v2249
    %v2300 = vsel %vm2200, %v2131, %v2250
    %v2301 = vsel %vm2201, %v2135, %v2251
    %v2302 = vsel %vm2202, %v2137, %v2252
    %v2303 = vsel %vm2203, %v2139, %v2253
    %v2304 = vsel %vm2204, %v2141, %v2254
    %v2305 = vsel %vm2205, %v2145, %v2255
    %v2306 = vsel %vm2206, %v2147, %v2256
    %v2307 = vsel %vm2207, %v2149, %v2257
    %v2308 = vsel %vm2208, %v2151, %v2258
    %v2309 = vsel %vm2209, %v2155, %v2259
    %v2310 = vsel %vm2210, %v2157, %v2260
    %v2311 = vpack.c.bf16 %v2263, %v2261
    %v2312 = vpack.c.bf16 %v2264, %v2262
    %v2313 = vpack.c.bf16 %v2267, %v2265
    %v2314 = vpack.c.bf16 %v2268, %v2266
    %v2315 = vpack.c.bf16 %v2271, %v2269
    %v2316 = vpack.c.bf16 %v2272, %v2270
    %v2317 = vpack.c.bf16 %v2275, %v2273
    %v2318 = vpack.c.bf16 %v2276, %v2274
    %v2319 = vpack.c.bf16 %v2279, %v2277
    %v2320 = vpack.c.bf16 %v2280, %v2278
    %v2321 = vpack.c.bf16 %v2283, %v2281
    %v2322 = vpack.c.bf16 %v2284, %v2282
    %v2323 = vpack.c.bf16 %v2287, %v2285
    %v2324 = vpack.c.bf16 %v2288, %v2286
    %v2325 = vpack.c.bf16 %v2291, %v2289
    %v2326 = vpack.c.bf16 %v2292, %v2290
    %v2327 = vpack.c.bf16 %v2295, %v2293
    %v2328 = vpack.c.bf16 %v2296, %v2294
    %v2329 = vpack.c.bf16 %v2299, %v2297
    %v2330 = vpack.c.bf16 %v2300, %v2298
    %v2331 = vpack.c.bf16 %v2303, %v2301
    %v2332 = vpack.c.bf16 %v2304, %v2302
    %v2333 = vpack.c.bf16 %v2307, %v2305
    %v2334 = vpack.c.bf16 %v2308, %v2306
    %v2335 = vpack.c.bf16 %v2309, %v2309
    %v2336 = vpack.c.bf16 %v2310, %v2310
    %v2337 = vld [vmem:[%s5] sm:$0xf]
    %v2338 = vld [vmem:[%s5 + $0x4] sm:$0xf]
    %v2339 = vld [vmem:[%s5 + $0x8] sm:$0xf]
    %v2340 = vld [vmem:[%s5 + $0xc] sm:$0xf]
    %v2341 = vld [vmem:[%s5 + $0x10] sm:$0xf]
    %v2342 = vld [vmem:[%s5 + $0x14] sm:$0xf]
    %v2343 = vld [vmem:[%s5 + $0x18] sm:$0xf]
    %v2344 = vld [vmem:[%s5 + $0x1c] sm:$0xf]
    %v2345 = vld [vmem:[%s5 + $0x20] sm:$0xf]
    %v2346 = vld [vmem:[%s5 + $0x24] sm:$0xf]
    %v2347 = vld [vmem:[%s5 + $0x28] sm:$0xf]
    %v2348 = vld [vmem:[%s5 + $0x2c] sm:$0xf]
    %v2349 = vld [vmem:[%s5 + $0x30] sm:$0xf]
    %v2350 = vld [vmem:[%s5 + $0x34] sm:$0xf]
    %v2351 = vld [vmem:[%s5 + $0x38] sm:$0xf]
    %v2352 = vld [vmem:[%s5 + $0x3c] sm:$0xf]
    %v2353 = vld [vmem:[%s5 + $0x40] sm:$0xf]
    %v2354 = vld [vmem:[%s5 + $0x44] sm:$0xf]
    %v2355 = vld [vmem:[%s5 + $0x48] sm:$0xf]
    %v2356 = vld [vmem:[%s5 + $0x4c] sm:$0xf]
    %v2357 = vld [vmem:[%s5 + $0x50] sm:$0xf]
    %v2358 = vld [vmem:[%s5 + $0x54] sm:$0xf]
    %v2359 = vld [vmem:[%s5 + $0x58] sm:$0xf]
    %v2360 = vld [vmem:[%s5 + $0x5c] sm:$0xf]
    %v2361 = vld [vmem:[%s5 + $0x60] sm:$0xf]
    %v2362 = vld [vmem:[%s5 + $0x64] sm:$0xf]
    %v2363 = vld [vmem:[%s5 + $0x68] sm:$0xf]
    %v2364 = vld [vmem:[%s5 + $0x6c] sm:$0xf]
    %v2365 = vld [vmem:[%s5 + $0x70] sm:$0xf]
    %v2366 = vld [vmem:[%s5 + $0x74] sm:$0xf]
    %v2367 = vld [vmem:[%s5 + $0x78] sm:$0xf]
    %v2368 = vld [vmem:[%s5 + $0x7c] sm:$0xf]
    %v2369 = vld [vmem:[#allocation2] sm:$0x1]
    %v2371 = vlaneseq
    %v2372 = vshrl.u32 %v2371, 7
    %v2373 = vsub.s32 0, %v2372
    %v2374 = vrot.slane %v2369, %v2373
    %v2408 = vunpack.c.l.b16 %v2337
    %v2409 = vunpack.c.l.b16 %v2338
    %v2410 = vunpack.c.l.b16 %v2339
    %v2411 = vunpack.c.l.b16 %v2340
    %v2412 = vunpack.c.l.b16 %v2341
    %v2413 = vunpack.c.l.b16 %v2342
    %v2414 = vunpack.c.l.b16 %v2343
    %v2415 = vunpack.c.l.b16 %v2344
    %v2416 = vunpack.c.l.b16 %v2345
    %v2417 = vunpack.c.l.b16 %v2346
    %v2418 = vunpack.c.l.b16 %v2347
    %v2419 = vunpack.c.l.b16 %v2348
    %v2420 = vunpack.c.l.b16 %v2349
    %v2421 = vunpack.c.l.b16 %v2350
    %v2422 = vunpack.c.l.b16 %v2351
    %v2423 = vunpack.c.l.b16 %v2352
    %v2424 = vunpack.c.l.b16 %v2353
    %v2425 = vunpack.c.l.b16 %v2354
    %v2426 = vunpack.c.l.b16 %v2355
    %v2427 = vunpack.c.l.b16 %v2356
    %v2428 = vunpack.c.l.b16 %v2357
    %v2429 = vunpack.c.l.b16 %v2358
    %v2430 = vunpack.c.l.b16 %v2359
    %v2431 = vunpack.c.l.b16 %v2360
    %v2432 = vunpack.c.l.b16 %v2361
    %v2433 = vunpack.c.l.b16 %v2362
    %v2434 = vunpack.c.l.b16 %v2363
    %v2435 = vunpack.c.l.b16 %v2364
    %v2436 = vunpack.c.l.b16 %v2365
    %v2437 = vunpack.c.l.b16 %v2366
    %v2438 = vunpack.c.l.b16 %v2367
    %v2439 = vunpack.c.l.b16 %v2368
    %v2440 = vpack.c.b16 %v2409, %v2408
    %v2441 = vpack.c.b16 %v2411, %v2410
    %v2442 = vpack.c.b16 %v2413, %v2412
    %v2443 = vpack.c.b16 %v2415, %v2414
    %v2444 = vpack.c.b16 %v2417, %v2416
    %v2445 = vpack.c.b16 %v2419, %v2418
    %v2446 = vpack.c.b16 %v2421, %v2420
    %v2447 = vpack.c.b16 %v2423, %v2422
    %v2448 = vpack.c.b16 %v2425, %v2424
    %v2449 = vpack.c.b16 %v2427, %v2426
    %v2450 = vpack.c.b16 %v2429, %v2428
    %v2451 = vpack.c.b16 %v2431, %v2430
    %v2452 = vpack.c.b16 %v2433, %v2432
    %v2453 = vpack.c.b16 %v2435, %v2434
    %v2454 = vpack.c.b16 %v2437, %v2436
    %v2455 = vpack.c.b16 %v2439, %v2438
    %2472 = vmatprep.subr.bf16.mxu0 0
    %2473 = vmatpush1.bf16.msra.mxu0 %v2440
    %2474 = vmatprep.subr.bf16.mxu0 0
    %2475 = vmatpush1.bf16.msra.mxu0 %v2441
    %2476 = vmatprep.subr.bf16.mxu0 0
    %2477 = vmatpush1.bf16.msra.mxu0 %v2442
    %2478 = vmatprep.subr.bf16.mxu0 0
    %2479 = vmatpush1.bf16.msra.mxu0 %v2443
    %2480 = vmatprep.subr.bf16.mxu0 0
    %2481 = vmatpush1.bf16.msra.mxu0 %v2444
    %2482 = vmatprep.subr.bf16.mxu0 0
    %2483 = vmatpush1.bf16.msra.mxu0 %v2445
    %2484 = vmatprep.subr.bf16.mxu0 0
    %2485 = vmatpush1.bf16.msra.mxu0 %v2446
    %2486 = vmatprep.subr.bf16.mxu0 0
    %2487 = vmatpush1.bf16.msra.mxu0 %v2447
    %2488 = vmatprep.subr.bf16.mxu0 0
    %2489 = vmatpush1.bf16.msra.mxu0 %v2448
    %2490 = vmatprep.subr.bf16.mxu0 0
    %2491 = vmatpush1.bf16.msra.mxu0 %v2449
    %2492 = vmatprep.subr.bf16.mxu0 0
    %2493 = vmatpush1.bf16.msra.mxu0 %v2450
    %2494 = vmatprep.subr.bf16.mxu0 0
    %2495 = vmatpush1.bf16.msra.mxu0 %v2451
    %2496 = vmatprep.subr.bf16.mxu0 0
    %2497 = vmatpush1.bf16.msra.mxu0 %v2452
    %2498 = vmatprep.subr.bf16.mxu0 0
    %2499 = vmatpush1.bf16.msra.mxu0 %v2453
    %2500 = vmatprep.subr.bf16.mxu0 0
    %2501 = vmatpush1.bf16.msra.mxu0 %v2454
    %2502 = vmatprep.subr.bf16.mxu0 0
    %2503 = vmatpush1.bf16.msra.mxu0 %v2455
    %2504 = vmatprep.mubr.bf16.mxu0 %v2312
    %2505 = vmatmul.mubr.bf16.gmra.mrb[0].mxu0 %v2311
    %v2506 = vpop.f32.mrb[0].mxu0
    %v2507 = vadd.f32 %v2374, %v2506
    %v2508 = vpop.f32.mrb[0].mxu0
    %v2509 = vpop.f32.mrb[0].mxu0
    %v2510 = vadd.f32 %v2374, %v2509
    %v2511 = vpop.f32.mrb[0].mxu0
    %2512 = vmatprep.mubr.bf16.mxu0 %v2314
    %2513 = vmatmul.mubr.bf16.gmra.mrb[0].mxu0 %v2313
    %v2514 = vpop.f32.mrb[0].mxu0
    %v2515 = vadd.f32 %v2374, %v2514
    %v2516 = vpop.f32.mrb[0].mxu0
    %v2517 = vpop.f32.mrb[0].mxu0
    %v2518 = vadd.f32 %v2374, %v2517
    %v2519 = vpop.f32.mrb[0].mxu0
    %2520 = vmatprep.mubr.bf16.mxu0 %v2316
    %2521 = vmatmul.mubr.bf16.gmra.mrb[0].mxu0 %v2315
    %v2522 = vpop.f32.mrb[0].mxu0
    %v2523 = vadd.f32 %v2374, %v2522
    %v2524 = vpop.f32.mrb[0].mxu0
    %v2525 = vpop.f32.mrb[0].mxu0
    %v2526 = vadd.f32 %v2374, %v2525
    %v2527 = vpop.f32.mrb[0].mxu0
    %2528 = vmatprep.mubr.bf16.mxu0 %v2318
    %2529 = vmatmul.mubr.bf16.gmra.mrb[0].mxu0 %v2317
    %v2530 = vpop.f32.mrb[0].mxu0
    %v2531 = vadd.f32 %v2374, %v2530
    %v2532 = vpop.f32.mrb[0].mxu0
    %v2533 = vpop.f32.mrb[0].mxu0
    %v2534 = vadd.f32 %v2374, %v2533
    %v2535 = vpop.f32.mrb[0].mxu0
    %2536 = vmatprep.mubr.bf16.mxu0 %v2320
    %2537 = vmatmul.mubr.bf16.gmra.mrb[0].mxu0 %v2319
    %v2538 = vpop.f32.mrb[0].mxu0
    %v2539 = vadd.f32 %v2374, %v2538
    %v2540 = vpop.f32.mrb[0].mxu0
    %v2541 = vpop.f32.mrb[0].mxu0
    %v2542 = vadd.f32 %v2374, %v2541
    %v2543 = vpop.f32.mrb[0].mxu0
    %2544 = vmatprep.mubr.bf16.mxu0 %v2322
    %2545 = vmatmul.mubr.bf16.gmra.mrb[0].mxu0 %v2321
    %v2546 = vpop.f32.mrb[0].mxu0
    %v2547 = vadd.f32 %v2374, %v2546
    %v2548 = vpop.f32.mrb[0].mxu0
    %v2549 = vpop.f32.mrb[0].mxu0
    %v2550 = vadd.f32 %v2374, %v2549
    %v2551 = vpop.f32.mrb[0].mxu0
    %2552 = vmatprep.mubr.bf16.mxu0 %v2324
    %2553 = vmatmul.mubr.bf16.gmra.mrb[0].mxu0 %v2323
    %v2554 = vpop.f32.mrb[0].mxu0
    %v2555 = vadd.f32 %v2374, %v2554
    %v2556 = vpop.f32.mrb[0].mxu0
    %v2557 = vpop.f32.mrb[0].mxu0
    %v2558 = vadd.f32 %v2374, %v2557
    %v2559 = vpop.f32.mrb[0].mxu0
    %2560 = vmatprep.mubr.bf16.mxu0 %v2326
    %2561 = vmatmul.mubr.bf16.gmra.mrb[0].mxu0 %v2325
    %v2562 = vpop.f32.mrb[0].mxu0
    %v2563 = vadd.f32 %v2374, %v2562
    %v2564 = vpop.f32.mrb[0].mxu0
    %v2565 = vpop.f32.mrb[0].mxu0
    %v2566 = vadd.f32 %v2374, %v2565
    %v2567 = vpop.f32.mrb[0].mxu0
    %2568 = vmatprep.mubr.bf16.mxu0 %v2328
    %2569 = vmatmul.mubr.bf16.gmra.mrb[0].mxu0 %v2327
    %v2570 = vpop.f32.mrb[0].mxu0
    %v2571 = vadd.f32 %v2374, %v2570
    %v2572 = vpop.f32.mrb[0].mxu0
    %v2573 = vpop.f32.mrb[0].mxu0
    %v2574 = vadd.f32 %v2374, %v2573
    %v2575 = vpop.f32.mrb[0].mxu0
    %2576 = vmatprep.mubr.bf16.mxu0 %v2330
    %2577 = vmatmul.mubr.bf16.gmra.mrb[0].mxu0 %v2329
    %v2578 = vpop.f32.mrb[0].mxu0
    %v2579 = vadd.f32 %v2374, %v2578
    %v2580 = vpop.f32.mrb[0].mxu0
    %v2581 = vpop.f32.mrb[0].mxu0
    %v2582 = vadd.f32 %v2374, %v2581
    %v2583 = vpop.f32.mrb[0].mxu0
    %2584 = vmatprep.mubr.bf16.mxu0 %v2332
    %2585 = vmatmul.mubr.bf16.gmra.mrb[0].mxu0 %v2331
    %v2586 = vpop.f32.mrb[0].mxu0
    %v2587 = vadd.f32 %v2374, %v2586
    %v2588 = vpop.f32.mrb[0].mxu0
    %v2589 = vpop.f32.mrb[0].mxu0
    %v2590 = vadd.f32 %v2374, %v2589
    %v2591 = vpop.f32.mrb[0].mxu0
    %2592 = vmatprep.mubr.bf16.mxu0 %v2334
    %2593 = vmatmul.mubr.bf16.gmra.mrb[0].mxu0 %v2333
    %v2594 = vpop.f32.mrb[0].mxu0
    %v2595 = vadd.f32 %v2374, %v2594
    %v2596 = vpop.f32.mrb[0].mxu0
    %v2597 = vpop.f32.mrb[0].mxu0
    %v2598 = vadd.f32 %v2374, %v2597
    %v2599 = vpop.f32.mrb[0].mxu0
    %2600 = vmatprep.mubr.bf16.mxu0 %v2336
    %2601 = vmatmul.mubr.bf16.gmra.mrb[0].mxu0 %v2335
    %v2602 = vpop.f32.mrb[0].mxu0
    %v2603 = vadd.f32 %v2374, %v2602
    %v2604 = vpop.f32.mrb[0].mxu0
    %v2605 = vpop.f32.mrb[0].mxu0
    %v2606 = vpop.f32.mrb[0].mxu0
    %2607 = vdwg.mxu0
    %v2608 = vxor.u32 %v2507, 2147483648
    %v2609 = vxor.u32 %v2510, 2147483648
    %v2610 = vxor.u32 %v2515, 2147483648
    %v2611 = vxor.u32 %v2518, 2147483648
    %v2612 = vxor.u32 %v2523, 2147483648
    %v2613 = vxor.u32 %v2526, 2147483648
    %v2614 = vxor.u32 %v2531, 2147483648
    %v2615 = vxor.u32 %v2534, 2147483648
    %v2616 = vxor.u32 %v2539, 2147483648
    %v2617 = vxor.u32 %v2542, 2147483648
    %v2618 = vxor.u32 %v2547, 2147483648
    %v2619 = vxor.u32 %v2550, 2147483648
    %v2620 = vxor.u32 %v2555, 2147483648
    %v2621 = vxor.u32 %v2558, 2147483648
    %v2622 = vxor.u32 %v2563, 2147483648
    %v2623 = vxor.u32 %v2566, 2147483648
    %v2624 = vxor.u32 %v2571, 2147483648
    %v2625 = vxor.u32 %v2574, 2147483648
    %v2626 = vxor.u32 %v2579, 2147483648
    %v2627 = vxor.u32 %v2582, 2147483648
    %v2628 = vxor.u32 %v2587, 2147483648
    %v2629 = vxor.u32 %v2590, 2147483648
    %v2630 = vxor.u32 %v2595, 2147483648
    %v2631 = vxor.u32 %v2598, 2147483648
    %v2632 = vxor.u32 %v2603, 2147483648
    %v2633 = vmul.f32 %v2608, 1.442695
    %v2634 = vpow.pop %v2633
    %v2635 = vmul.f32 %v2609, 1.442695
    %v2636 = vpow.pop %v2635
    %v2637 = vmul.f32 %v2610, 1.442695
    %v2638 = vpow.pop %v2637
    %v2639 = vmul.f32 %v2611, 1.442695
    %v2640 = vpow.pop %v2639
    %v2641 = vmul.f32 %v2612, 1.442695
    %v2642 = vpow.pop %v2641
    %v2643 = vmul.f32 %v2613, 1.442695
    %v2644 = vpow.pop %v2643
    %v2645 = vmul.f32 %v2614, 1.442695
    %v2646 = vpow.pop %v2645
    %v2647 = vmul.f32 %v2615, 1.442695
    %v2648 = vpow.pop %v2647
    %v2649 = vmul.f32 %v2616, 1.442695
    %v2650 = vpow.pop %v2649
    %v2651 = vmul.f32 %v2617, 1.442695
    %v2652 = vpow.pop %v2651
    %v2653 = vmul.f32 %v2618, 1.442695
    %v2654 = vpow.pop %v2653
    %v2655 = vmul.f32 %v2619, 1.442695
    %v2656 = vpow.pop %v2655
    %v2657 = vmul.f32 %v2620, 1.442695
    %v2658 = vpow.pop %v2657
    %v2659 = vmul.f32 %v2621, 1.442695
    %v2660 = vpow.pop %v2659
    %v2661 = vmul.f32 %v2622, 1.442695
    %v2662 = vpow.pop %v2661
    %v2663 = vmul.f32 %v2623, 1.442695
    %v2664 = vpow.pop %v2663
    %v2665 = vmul.f32 %v2624, 1.442695
    %v2666 = vpow.pop %v2665
    %v2667 = vmul.f32 %v2625, 1.442695
    %v2668 = vpow.pop %v2667
    %v2669 = vmul.f32 %v2626, 1.442695
    %v2670 = vpow.pop %v2669
    %v2671 = vmul.f32 %v2627, 1.442695
    %v2672 = vpow.pop %v2671
    %v2673 = vmul.f32 %v2628, 1.442695
    %v2674 = vpow.pop %v2673
    %v2675 = vmul.f32 %v2629, 1.442695
    %v2676 = vpow.pop %v2675
    %v2677 = vmul.f32 %v2630, 1.442695
    %v2678 = vpow.pop %v2677
    %v2679 = vmul.f32 %v2631, 1.442695
    %v2680 = vpow.pop %v2679
    %v2681 = vmul.f32 %v2632, 1.442695
    %v2682 = vpow.pop %v2681
    %v2683 = vadd.f32 %v2634, 1.0
    %v2684 = vadd.f32 %v2636, 1.0
    %v2685 = vadd.f32 %v2638, 1.0
    %v2686 = vadd.f32 %v2640, 1.0
    %v2687 = vadd.f32 %v2642, 1.0
    %v2688 = vadd.f32 %v2644, 1.0
    %v2689 = vadd.f32 %v2646, 1.0
    %v2690 = vadd.f32 %v2648, 1.0
    %v2691 = vadd.f32 %v2650, 1.0
    %v2692 = vadd.f32 %v2652, 1.0
    %v2693 = vadd.f32 %v2654, 1.0
    %v2694 = vadd.f32 %v2656, 1.0
    %v2695 = vadd.f32 %v2658, 1.0
    %v2696 = vadd.f32 %v2660, 1.0
    %v2697 = vadd.f32 %v2662, 1.0
    %v2698 = vadd.f32 %v2664, 1.0
    %v2699 = vadd.f32 %v2666, 1.0
    %v2700 = vadd.f32 %v2668, 1.0
    %v2701 = vadd.f32 %v2670, 1.0
    %v2702 = vadd.f32 %v2672, 1.0
    %v2703 = vadd.f32 %v2674, 1.0
    %v2704 = vadd.f32 %v2676, 1.0
    %v2705 = vadd.f32 %v2678, 1.0
    %v2706 = vadd.f32 %v2680, 1.0
    %v2707 = vadd.f32 %v2682, 1.0
    %v2708 = vrcp.pop %v2683
    %v2709 = vmul.f32 1.0, %v2708
    %v2710 = vrcp.pop %v2684
    %v2711 = vmul.f32 1.0, %v2710
    %v2712 = vrcp.pop %v2685
    %v2713 = vmul.f32 1.0, %v2712
    %v2714 = vrcp.pop %v2686
    %v2715 = vmul.f32 1.0, %v2714
    %v2716 = vrcp.pop %v2687
    %v2717 = vmul.f32 1.0, %v2716
    %v2718 = vrcp.pop %v2688
    %v2719 = vmul.f32 1.0, %v2718
    %v2720 = vrcp.pop %v2689
    %v2721 = vmul.f32 1.0, %v2720
    %v2722 = vrcp.pop %v2690
    %v2723 = vmul.f32 1.0, %v2722
    %v2724 = vrcp.pop %v2691
    %v2725 = vmul.f32 1.0, %v2724
    %v2726 = vrcp.pop %v2692
    %v2727 = vmul.f32 1.0, %v2726
    %v2728 = vrcp.pop %v2693
    %v2729 = vmul.f32 1.0, %v2728
    %v2730 = vrcp.pop %v2694
    %v2731 = vmul.f32 1.0, %v2730
    %v2732 = vrcp.pop %v2695
    %v2733 = vmul.f32 1.0, %v2732
    %v2734 = vrcp.pop %v2696
    %v2735 = vmul.f32 1.0, %v2734
    %v2736 = vrcp.pop %v2697
    %v2737 = vmul.f32 1.0, %v2736
    %v2738 = vrcp.pop %v2698
    %v2739 = vmul.f32 1.0, %v2738
    %v2740 = vrcp.pop %v2699
    %v2741 = vmul.f32 1.0, %v2740
    %v2742 = vrcp.pop %v2700
    %v2743 = vmul.f32 1.0, %v2742
    %v2744 = vrcp.pop %v2701
    %v2745 = vmul.f32 1.0, %v2744
    %v2746 = vrcp.pop %v2702
    %v2747 = vmul.f32 1.0, %v2746
    %v2748 = vrcp.pop %v2703
    %v2749 = vmul.f32 1.0, %v2748
    %v2750 = vrcp.pop %v2704
    %v2751 = vmul.f32 1.0, %v2750
    %v2752 = vrcp.pop %v2705
    %v2753 = vmul.f32 1.0, %v2752
    %v2754 = vrcp.pop %v2706
    %v2755 = vmul.f32 1.0, %v2754
    %v2756 = vrcp.pop %v2707
    %v2757 = vmul.f32 1.0, %v2756
    %vm2758 = vcmask 7168
    %2759 = vst.msk [vmem:[%s7] sm:$0xff] %vm2758, %v2709
    %2760 = vst.msk [vmem:[%s7 + $0x8] sm:$0xff] %vm2758, %v2711
    %2761 = vst.msk [vmem:[%s7 + $0x10] sm:$0xff] %vm2758, %v2713
    %2762 = vst.msk [vmem:[%s7 + $0x18] sm:$0xff] %vm2758, %v2715
    %2763 = vst.msk [vmem:[%s7 + $0x20] sm:$0xff] %vm2758, %v2717
    %2764 = vst.msk [vmem:[%s7 + $0x28] sm:$0xff] %vm2758, %v2719
    %2765 = vst.msk [vmem:[%s7 + $0x30] sm:$0xff] %vm2758, %v2721
    %2766 = vst.msk [vmem:[%s7 + $0x38] sm:$0xff] %vm2758, %v2723
    %2767 = vst.msk [vmem:[%s7 + $0x40] sm:$0xff] %vm2758, %v2725
    %2768 = vst.msk [vmem:[%s7 + $0x48] sm:$0xff] %vm2758, %v2727
    %2769 = vst.msk [vmem:[%s7 + $0x50] sm:$0xff] %vm2758, %v2729
    %2770 = vst.msk [vmem:[%s7 + $0x58] sm:$0xff] %vm2758, %v2731
    %2771 = vst.msk [vmem:[%s7 + $0x60] sm:$0xff] %vm2758, %v2733
    %2772 = vst.msk [vmem:[%s7 + $0x68] sm:$0xff] %vm2758, %v2735
    %2773 = vst.msk [vmem:[%s7 + $0x70] sm:$0xff] %vm2758, %v2737
    %2774 = vst.msk [vmem:[%s7 + $0x78] sm:$0xff] %vm2758, %v2739
    %2775 = vst.msk [vmem:[%s7 + $0x80] sm:$0xff] %vm2758, %v2741
    %2776 = vst.msk [vmem:[%s7 + $0x88] sm:$0xff] %vm2758, %v2743
    %2777 = vst.msk [vmem:[%s7 + $0x90] sm:$0xff] %vm2758, %v2745
    %2778 = vst.msk [vmem:[%s7 + $0x98] sm:$0xff] %vm2758, %v2747
    %2779 = vst.msk [vmem:[%s7 + $0xa0] sm:$0xff] %vm2758, %v2749
    %2780 = vst.msk [vmem:[%s7 + $0xa8] sm:$0xff] %vm2758, %v2751
    %2781 = vst.msk [vmem:[%s7 + $0xb0] sm:$0xff] %vm2758, %v2753
    %2782 = vst.msk [vmem:[%s7 + $0xb8] sm:$0xff] %vm2758, %v2755
    %2783 = vst.msk [vmem:[%s7 + $0xc0] sm:$0xff] %vm2758, %v2757
    // Predicated region
    $region42: #{tpu_custom_call.1} parent=1 // pred_check
      _
    $region43: #{tpu_custom_call.1} parent=1 // pred_check_branch
      %2785 = sbr.rel (0) target = $region45
    $region44: #{tpu_custom_call.1} parent=1 // pred_region
      _
    $region45: #{tpu_custom_call.1} parent=1 // pred_fallthru
      _
    // Predicated region
    $region46: #{tpu_custom_call.1} parent=1 // pred_check
      _
    $region47: #{tpu_custom_call.1} parent=1 // pred_check_branch
      %2787 = sbr.rel (0) target = $region49
    $region48: #{tpu_custom_call.1} parent=1 // pred_region
      _
    $region49: #{tpu_custom_call.1} parent=1 // pred_fallthru
      _
    %2788 = vsyncpa [#allocation4], 1
    %2789 = vsyncpa [#allocation6], 1

</llo_original>
